<compile_context>
chip_gen: v7x
topology: tpu7x:2x2x1
jax: 0.10.0
libtpu: 0.0.40
codegen_flags: <defaults>
</compile_context>

<pallas_src>
import jax
import jax.numpy as jnp
from jax import lax
from jax.experimental import pallas as pl
from jax.experimental.pallas import tpu as pltpu

LANE = 128          # vreg lane width: pad N / output dims to this (unmasked stores)
NEG_INF = -1e30     # bias for padded class columns -> softmax prob exactly 0
MAX_M_ROWS = 1024   # target M rows fed to the MXU per grid step


def _round_up(x, m):
    return (x + m - 1) // m * m


def _expm1_neg(x):
    # expm1(x) for x <= 0 via the cancellation-free identity
    #   expm1(x) = tanh(x/2) * (exp(x) + 1)
    # Fixes the exp(x)-1 cancellation near 0 flagged in review, using only
    # exp/tanh (both EUP ops with guaranteed Mosaic lowerings).
    return jnp.tanh(0.5 * x) * (jnp.exp(x) + 1.0)


def _elu(x):
    return jnp.where(x > 0.0, x, _expm1_neg(jnp.minimum(x, 0.0)))


def _pick_tiles(batch, hw):
    """Pick (block_b, hw_blk) so rows-per-step ~= MAX_M_ROWS: amortizes the
    ~0.35us/grid-step overhead and fills the MXU M dimension."""
    if hw > MAX_M_ROWS:
        # Large images: one image per batch step, split the spatial reduction
        # axis so patch blocks stay within VMEM (v7x has only 64 MiB).
        cands = [d for d in range(8, hw + 1, 8) if hw % d == 0 and d <= MAX_M_ROWS]
        return 1, (max(cands) if cands else hw)
    divs = [d for d in range(1, batch + 1) if batch % d == 0]
    block_b = min(divs, key=lambda d: abs(d * hw - MAX_M_ROWS))
    return block_b, hw


# ---------------------------------------------------------------------------
# Fused kernel: conv (im2col matmul) + ELU + running global max pool
#               + linear + softmax
# ---------------------------------------------------------------------------
def yopo_fused_kernel(patch_ref, cw_ref, cb_ref, fw_ref, fb_ref, out_ref,
                      fmax_ref):
    # patch_ref: (Bblk, HWblk, P)      bf16 im2col patches
    # cw_ref:    (P, Cout_pad)         bf16 conv weight (lane-padded Cout)
    # cb_ref:    (1, Cout_pad)         f32 conv bias (zeros in padding)
    # fw_ref:    (Cout_pad, NC_pad)    bf16 fc weight (zero-padded rows/cols)
    # fb_ref:    (1, NC_pad)           f32 fc bias (NEG_INF in padded classes)
    # out_ref:   (Bblk, 1, NC_pad)     f32 softmax probabilities
    # fmax_ref:  (Bblk, Cout_pad)      f32 running global-max-pool accumulator
    bblk, hw_blk, p = patch_ref.shape
    cout_pad = cw_ref.shape[1]
    h = pl.program_id(1)

    @pl.when(h == 0)
    def _init():
        fmax_ref[...] = jnp.full(fmax_ref.shape, -jnp.inf, jnp.float32)

    # Conv as one big im2col matmul on the MXU (bf16 operands, f32 accumulate).
    x = patch_ref[...].reshape(bblk * hw_blk, p)
    acc = jnp.dot(x, cw_ref[...], preferred_element_type=jnp.float32)
    acc = _elu(acc + cb_ref[...])                              # (Bblk*HWblk, Cout_pad)

    # Running global max pool per image (sublane reduction).
    fmax_ref[...] = jnp.maximum(
        fmax_ref[...],
        jnp.max(acc.reshape(bblk, hw_blk, cout_pad), axis=1))

    # Classification head fused in: linear + softmax, written once at the end.
    @pl.when(h == pl.num_programs(1) - 1)
    def _finalize():
        feat = fmax_ref[...]                                   # (Bblk, Cout_pad)
        logits = jnp.dot(feat.astype(fw_ref.dtype), fw_ref[...],
                         preferred_element_type=jnp.float32) + fb_ref[...]
        m = jnp.max(logits, axis=-1, keepdims=True)
        e = jnp.exp(logits - m)                                # padded classes -> 0
        probs = e / jnp.sum(e, axis=-1, keepdims=True)
        out_ref[...] = probs[:, None, :]                       # lane-dense 128 store


# ---------------------------------------------------------------------------
# Wrapper (layout change, im2col, padding to lane-dense dims, pallas_call)
# ---------------------------------------------------------------------------
def yopo_final_forward(x_nchw, params):
    B, Cin, H, W = x_nchw.shape
    K = 3
    HW = H * W
    P = K * K * Cin

    conv_w = params["conv_w"]                     # (K, K, Cin, Cout) HWIO
    conv_b = params["conv_b"]                     # (Cout,)
    fc_w = params["fc_w"]                         # (Cout, NC)
    fc_b = params["fc_b"]                         # (NC,)
    Cout = conv_w.shape[-1]
    NC = fc_w.shape[-1]
    Cout_pad = _round_up(Cout, LANE)
    NC_pad = _round_up(NC, LANE)

    # ---- glue (XLA): NCHW -> NHWC, pad, im2col, bf16 cast of MXU operands ----
    x = jnp.transpose(x_nchw, (0, 2, 3, 1))
    xp = jnp.pad(x, ((0, 0), (1, 1), (1, 1), (0, 0)))
    # (kh, kw, cin) ordering matches the flattened HWIO weight below.
    patches = jnp.concatenate(
        [xp[:, i:i + H, j:j + W, :] for i in range(K) for j in range(K)],
        axis=-1).reshape(B, HW, P).astype(jnp.bfloat16)
    # TODO(synk): at production DISCA sizes replace this JAX-side im2col with an
    # in-kernel 9-tap accumulation over the padded NHWC tile to cut LHS HBM
    # traffic 9x; at these sizes bf16 patches are already tiny.

    cw = jnp.zeros((P, Cout_pad), jnp.float32).at[:, :Cout].set(
        conv_w.reshape(P, Cout)).astype(jnp.bfloat16)
    cb = jnp.zeros((1, Cout_pad), jnp.float32).at[0, :Cout].set(conv_b)
    fw = jnp.zeros((Cout_pad, NC_pad), jnp.float32).at[:Cout, :NC].set(
        fc_w).astype(jnp.bfloat16)
    fb = jnp.full((1, NC_pad), NEG_INF, jnp.float32).at[0, :NC].set(fc_b)

    block_b, hw_blk = _pick_tiles(B, HW)
    grid = (B // block_b, HW // hw_blk)

    out_pad = pl.pallas_call(
        yopo_fused_kernel,
        out_shape=jax.ShapeDtypeStruct((B, 1, NC_pad), jnp.float32),
        grid=grid,
        in_specs=[
            pl.BlockSpec((block_b, hw_blk, P), lambda b, h: (b, h, 0)),
            # constant index maps -> weights stay VMEM-resident across steps
            pl.BlockSpec((P, Cout_pad), lambda b, h: (0, 0)),
            pl.BlockSpec((1, Cout_pad), lambda b, h: (0, 0)),
            pl.BlockSpec((Cout_pad, NC_pad), lambda b, h: (0, 0)),
            pl.BlockSpec((1, NC_pad), lambda b, h: (0, 0)),
        ],
        out_specs=pl.BlockSpec((block_b, 1, NC_pad), lambda b, h: (b, 0, 0)),
        scratch_shapes=[pltpu.VMEM((block_b, Cout_pad), jnp.float32)],
        compiler_params=pltpu.CompilerParams(
            dimension_semantics=("parallel", "arbitrary"),
            vmem_limit_bytes=32 * 1024 * 1024,
        ),
    )(patches, cw, cb, fw, fb)
    return out_pad[:, 0, :NC]


# ---------------------------------------------------------------------------
# Pure-JAX reference (independent conv path; same bf16 operand casts)
# ---------------------------------------------------------------------------
def yopo_forward_reference(x_nchw, params):
    xb = x_nchw.astype(jnp.bfloat16)
    wb = params["conv_w"].astype(jnp.bfloat16)
    y = lax.conv_general_dilated(
        xb, wb, window_strides=(1, 1), padding="SAME",
        dimension_numbers=("NCHW", "HWIO", "NCHW"),
        preferred_element_type=jnp.float32)
    y = y + params["conv_b"][None, :, None, None]
    y = jax.nn.elu(y)
    feat = jnp.max(y, axis=(2, 3))                               # (B, Cout)
    logits = jnp.dot(feat.astype(jnp.bfloat16),
                     params["fc_w"].astype(jnp.bfloat16),
                     preferred_element_type=jnp.float32) + params["fc_b"]
    return jax.nn.softmax(logits, axis=1)


def init_params(key, cin, cout, num_classes, k=3):
    k1, k2, k3, k4 = jax.random.split(key, 4)
    scale_c = 1.0 / jnp.sqrt(k * k * cin)
    scale_f = 1.0 / jnp.sqrt(cout)
    return {
        "conv_w": jax.random.normal(k1, (k, k, cin, cout), jnp.float32) * scale_c,
        "conv_b": jax.random.normal(k2, (cout,), jnp.float32) * scale_c,
        "fc_w":   jax.random.normal(k3, (cout, num_classes), jnp.float32) * scale_f,
        "fc_b":   jax.random.normal(k4, (num_classes,), jnp.float32) * scale_f,
    }


if __name__ == "__main__":
    B, Cin, H, W = 2, 4, 16, 16
    Cout, NUM_CLASSES = 32, 8

    key = jax.random.PRNGKey(0)
    k_x, k_p = jax.random.split(key)
    x = jax.random.normal(k_x, (B, Cin, H, W), jnp.float32)   # NCHW like PyTorch
    params = init_params(k_p, Cin, Cout, NUM_CLASSES)

    out = jax.jit(yopo_final_forward)(x, params)
    out = jax.block_until_ready(out)

    assert out.shape == (B, NUM_CLASSES)
    # softmax rows must sum to 1
    assert bool(jnp.allclose(jnp.sum(out, axis=1), 1.0, atol=1e-5))
    # layout/ordering check against lax.conv_general_dilated (same bf16 casts)
    ref = yopo_forward_reference(x, params)
    assert bool(jnp.allclose(out, ref, atol=2e-2)), float(jnp.max(jnp.abs(out - ref)))
    print("KERNEL_OK")
</pallas_src>

<mosaic_0001>
module attributes {stable_mosaic.version = 11 : i64} {
  func.func @yopo_fused_kernel(%arg0: i32, %arg1: i32, %arg2: memref<2x256x36xbf16, #tpu.memory_space<vmem>>, %arg3: memref<36x128xbf16, #tpu.memory_space<vmem>>, %arg4: memref<1x128xf32, #tpu.memory_space<vmem>>, %arg5: memref<128x128xbf16, #tpu.memory_space<vmem>>, %arg6: memref<1x128xf32, #tpu.memory_space<vmem>>, %arg7: memref<2x1x128xf32, #tpu.memory_space<vmem>>, %arg8: memref<2x128xf32, #tpu.memory_space<vmem>>) attributes {dimension_semantics = [#tpu.dimension_semantics<parallel>, #tpu.dimension_semantics<arbitrary>], iteration_bounds = array<i64: 1, 1>, scalar_prefetch = 0 : i64, scratch_operands = 1 : i64, tpu.core_type = #tpu.core_type<tc>, window_params = [{transform_indices = @transform_0, window_bounds = array<i64: 2, 256, 36>}, {pipeline_mode = #tpu.pipeline_mode<synchronous>, transform_indices = @transform_1, window_bounds = array<i64: 36, 128>}, {pipeline_mode = #tpu.pipeline_mode<synchronous>, transform_indices = @transform_2, window_bounds = array<i64: 1, 128>}, {pipeline_mode = #tpu.pipeline_mode<synchronous>, transform_indices = @transform_3, window_bounds = array<i64: 128, 128>}, {pipeline_mode = #tpu.pipeline_mode<synchronous>, transform_indices = @transform_4, window_bounds = array<i64: 1, 128>}, {transform_indices = @transform_5, window_bounds = array<i64: 2, 1, 128>}]} {
    %c0_i32 = arith.constant 0 : i32
    %0 = arith.cmpi eq, %arg1, %c0_i32 : i32
    %1 = arith.extui %0 : i1 to i32
    %c0_i32_0 = arith.constant 0 : i32
    %2 = arith.cmpi ne, %1, %c0_i32_0 : i32
    scf.if %2 {
      %cst_18 = arith.constant 0xFF800000 : f32
      %30 = vector.broadcast %cst_18 : f32 to vector<2x128xf32>
      %c0_19 = arith.constant 0 : index
      %c0_20 = arith.constant 0 : index
      %31 = vector.load %arg8[%c0_19, %c0_20] : memref<2x128xf32, #tpu.memory_space<vmem>>, vector<2x128xf32>
      tpu.vector_store %arg8[%c0_19, %c0_20], %30 {strides = array<i32>} : memref<2x128xf32, #tpu.memory_space<vmem>>, vector<2x128xf32>,
    } else {
    }
    %c0 = arith.constant 0 : index
    %c0_1 = arith.constant 0 : index
    %c0_2 = arith.constant 0 : index
    %3 = vector.load %arg2[%c0, %c0_1, %c0_2] : memref<2x256x36xbf16, #tpu.memory_space<vmem>>, vector<2x256x36xbf16>
    %4 = vector.shape_cast %3 : vector<2x256x36xbf16> to vector<512x36xbf16>
    %c0_3 = arith.constant 0 : index
    %c0_4 = arith.constant 0 : index
    %5 = vector.load %arg3[%c0_3, %c0_4] : memref<36x128xbf16, #tpu.memory_space<vmem>>, vector<36x128xbf16>
    %cst = arith.constant dense<0.000000e+00> : vector<512x128xf32>
    %6 = tpu.matmul %4, %5, %cst {dimension_numbers = #tpu.dot_dimension_numbers<[1], [0], [0], [1], [0, 0, 1, 1], [], []>} : vector<512x36xbf16>, vector<36x128xbf16>, vector<512x128xf32> -> vector<512x128xf32>
    %c0_5 = arith.constant 0 : index
    %c0_6 = arith.constant 0 : index
    %7 = vector.load %arg4[%c0_5, %c0_6] : memref<1x128xf32, #tpu.memory_space<vmem>>, vector<1x128xf32>
    %8 = vector.broadcast %7 : vector<1x128xf32> to vector<512x128xf32>
    %9 = arith.addf %6, %8 : vector<512x128xf32>
    %cst_7 = arith.constant 0.000000e+00 : f32
    %10 = vector.broadcast %cst_7 : f32 to vector<512x128xf32>
    %11 = arith.cmpf ogt, %9, %10 : vector<512x128xf32>
    %cst_8 = arith.constant 0.000000e+00 : f32
    %12 = vector.broadcast %cst_8 : f32 to vector<512x128xf32>
    %13 = arith.minimumf %9, %12 : vector<512x128xf32>
    %cst_9 = arith.constant 5.000000e-01 : f32
    %14 = vector.broadcast %cst_9 : f32 to vector<512x128xf32>
    %15 = arith.mulf %14, %13 : vector<512x128xf32>
    %16 = math.tanh %15 : vector<512x128xf32>
    %17 = math.exp %13 : vector<512x128xf32>
    %cst_10 = arith.constant 1.000000e+00 : f32
    %18 = vector.broadcast %cst_10 : f32 to vector<512x128xf32>
    %19 = arith.addf %17, %18 : vector<512x128xf32>
    %20 = arith.mulf %16, %19 : vector<512x128xf32>
    %21 = arith.select %11, %9, %20 : vector<512x128xi1>, vector<512x128xf32>
    %c0_11 = arith.constant 0 : index
    %c0_12 = arith.constant 0 : index
    %22 = vector.load %arg8[%c0_11, %c0_12] : memref<2x128xf32, #tpu.memory_space<vmem>>, vector<2x128xf32>
    %23 = vector.shape_cast %21 : vector<512x128xf32> to vector<2x256x128xf32>
    %cst_13 = arith.constant dense<0xFF800000> : vector<2x128xf32>
    %24 = vector.multi_reduction <maximumf>, %23, %cst_13 [1] : vector<2x256x128xf32> to vector<2x128xf32>
    %25 = arith.maximumf %22, %24 : vector<2x128xf32>
    %c0_14 = arith.constant 0 : index
    %c0_15 = arith.constant 0 : index
    %26 = vector.load %arg8[%c0_14, %c0_15] : memref<2x128xf32, #tpu.memory_space<vmem>>, vector<2x128xf32>
    tpu.vector_store %arg8[%c0_14, %c0_15], %25 {strides = array<i32>} : memref<2x128xf32, #tpu.memory_space<vmem>>, vector<2x128xf32>,
    %c0_i32_16 = arith.constant 0 : i32
    %27 = arith.cmpi eq, %arg1, %c0_i32_16 : i32
    %28 = arith.extui %27 : i1 to i32
    %c0_i32_17 = arith.constant 0 : i32
    %29 = arith.cmpi ne, %28, %c0_i32_17 : i32
    scf.if %29 {
      %c0_18 = arith.constant 0 : index
      %c0_19 = arith.constant 0 : index
      %30 = vector.load %arg8[%c0_18, %c0_19] : memref<2x128xf32, #tpu.memory_space<vmem>>, vector<2x128xf32>
      %31 = arith.truncf %30 : vector<2x128xf32> to vector<2x128xbf16>
      %c0_20 = arith.constant 0 : index
      %c0_21 = arith.constant 0 : index
      %32 = vector.load %arg5[%c0_20, %c0_21] : memref<128x128xbf16, #tpu.memory_space<vmem>>, vector<128x128xbf16>
      %cst_22 = arith.constant dense<0.000000e+00> : vector<2x128xf32>
      %33 = tpu.matmul %31, %32, %cst_22 {dimension_numbers = #tpu.dot_dimension_numbers<[1], [0], [0], [1], [0, 0, 1, 1], [], []>} : vector<2x128xbf16>, vector<128x128xbf16>, vector<2x128xf32> -> vector<2x128xf32>
      %c0_23 = arith.constant 0 : index
      %c0_24 = arith.constant 0 : index
      %34 = vector.load %arg6[%c0_23, %c0_24] : memref<1x128xf32, #tpu.memory_space<vmem>>, vector<1x128xf32>
      %35 = vector.broadcast %34 : vector<1x128xf32> to vector<2x128xf32>
      %36 = arith.addf %33, %35 : vector<2x128xf32>
      %cst_25 = arith.constant dense<0xFF800000> : vector<2xf32>
      %37 = vector.multi_reduction <maximumf>, %36, %cst_25 [1] : vector<2x128xf32> to vector<2xf32>
      %38 = vector.shape_cast %37 : vector<2xf32> to vector<2x1xf32>
      %39 = vector.broadcast %38 : vector<2x1xf32> to vector<2x128xf32>
      %40 = arith.subf %36, %39 : vector<2x128xf32>
      %41 = math.exp %40 : vector<2x128xf32>
      %cst_26 = arith.constant dense<0.000000e+00> : vector<2xf32>
      %42 = vector.multi_reduction <add>, %41, %cst_26 [1] : vector<2x128xf32> to vector<2xf32>
      %43 = vector.shape_cast %42 : vector<2xf32> to vector<2x1xf32>
      %44 = vector.broadcast %43 : vector<2x1xf32> to vector<2x128xf32>
      %45 = arith.divf %41, %44 : vector<2x128xf32>
      %46 = vector.shape_cast %45 : vector<2x128xf32> to vector<2x1x128xf32>
      %c0_27 = arith.constant 0 : index
      %c0_28 = arith.constant 0 : index
      %c0_29 = arith.constant 0 : index
      %47 = vector.load %arg7[%c0_27, %c0_28, %c0_29] : memref<2x1x128xf32, #tpu.memory_space<vmem>>, vector<2x1x128xf32>
      tpu.vector_store %arg7[%c0_27, %c0_28, %c0_29], %46 {strides = array<i32>} : memref<2x1x128xf32, #tpu.memory_space<vmem>>, vector<2x1x128xf32>,
    } else {
    }
    return
  }
  func.func @transform_0(%arg0: i32, %arg1: i32) -> (i32, i32, i32) {
    %c0_i32 = arith.constant 0 : i32
    %c0_i32_0 = arith.constant 0 : i32
    return %arg0, %arg1, %c0_i32 : i32, i32, i32
  }
  func.func @transform_1(%arg0: i32, %arg1: i32) -> (i32, i32) {
    %c0_i32 = arith.constant 0 : i32
    %c0_i32_0 = arith.constant 0 : i32
    %c0_i32_1 = arith.constant 0 : i32
    return %c0_i32, %c0_i32_0 : i32, i32
  }
  func.func @transform_2(%arg0: i32, %arg1: i32) -> (i32, i32) {
    %c0_i32 = arith.constant 0 : i32
    %c0_i32_0 = arith.constant 0 : i32
    %c0_i32_1 = arith.constant 0 : i32
    return %c0_i32, %c0_i32_0 : i32, i32
  }
  func.func @transform_3(%arg0: i32, %arg1: i32) -> (i32, i32) {
    %c0_i32 = arith.constant 0 : i32
    %c0_i32_0 = arith.constant 0 : i32
    %c0_i32_1 = arith.constant 0 : i32
    return %c0_i32, %c0_i32_0 : i32, i32
  }
  func.func @transform_4(%arg0: i32, %arg1: i32) -> (i32, i32) {
    %c0_i32 = arith.constant 0 : i32
    %c0_i32_0 = arith.constant 0 : i32
    %c0_i32_1 = arith.constant 0 : i32
    return %c0_i32, %c0_i32_0 : i32, i32
  }
  func.func @transform_5(%arg0: i32, %arg1: i32) -> (i32, i32, i32) {
    %c0_i32 = arith.constant 0 : i32
    %c0_i32_0 = arith.constant 0 : i32
    %c0_i32_1 = arith.constant 0 : i32
    return %arg0, %c0_i32, %c0_i32_0 : i32, i32, i32
  }
}

</mosaic_0001>

<llo_original>
// kernel: yopo_final_forward.1
$region0: #{yopo_final_forward.1}
  #allocation0 [shape = 'u32[]', space=smem, size = 0x4, offset = 0x4, fixed_abs, tag = 'smem constant byte address 0x4 - core index']
  #allocation1 [shape = 'u32[144,128]{1,0:T(1,128)}', space=vmem, size = 0x12000, scoped, tag = 'internal scratch']
  #allocation2 [shape = 'f32[2,128]{1,0:T(2,128)}', space=vmem, size = 0x400, scoped, tag = 'scratch operand']
  %s0 = inlined_call_operand.vmem [shape: bf16[2,256,36], index: 0, kind: input, shape index: {}]
  %s1 = inlined_call_operand.vmem [shape: bf16[36,128], index: 1, kind: input, shape index: {}]
  %s2 = inlined_call_operand.vmem [shape: f32[1,128], index: 2, kind: input, shape index: {}]
  %s3 = inlined_call_operand.vmem [shape: bf16[128,128], index: 3, kind: input, shape index: {}]
  %s4 = inlined_call_operand.vmem [shape: f32[1,128], index: 4, kind: input, shape index: {}]
  %s5 = inlined_call_operand.hbm [shape: f32[2,1,128], index: 5, kind: output, shape index: {}]
  %s6 = sld [smem:[#allocation0]]
  $region38: #{yopo_final_forward.1} parent=0
    _
  %s8 = ssub.s32 1, %s6
  %s9 = scalar_select 0, %s8, %s6
  $region1: #{yopo_final_forward.1} parent=0
    #allocation3 [shape = 'u8[1024]{0}', space=vmem, size = 0x400, scoped, tag = 'output window, operand 0, single buffered']
    #allocation4 [shape = 's32[1]{0}', space=sflag, size = 0x4, scoped, tag = 'scoped memory for yopo_final_forward.1']
    %10 = vsyncpa [#allocation4], 0
    // Predicated region
    $region2: #{yopo_final_forward.1} parent=1 // pred_check
      _
    $region3: #{yopo_final_forward.1} parent=1 // pred_check_branch
      %12 = sbr.rel (0) target = $region5
    $region4: #{yopo_final_forward.1} parent=1 // pred_region
      _
    $region5: #{yopo_final_forward.1} parent=1 // pred_fallthru
      _
    // Predicated region
    $region6: #{yopo_final_forward.1} parent=1 // pred_check
      _
    $region7: #{yopo_final_forward.1} parent=1 // pred_check_branch
      %14 = sbr.rel (0) target = $region9
    $region8: #{yopo_final_forward.1} parent=1 // pred_region
      _
    $region9: #{yopo_final_forward.1} parent=1 // pred_fallthru
      _
    // Predicated region
    $region10: #{yopo_final_forward.1} parent=1 // pred_check
      _
    $region11: #{yopo_final_forward.1} parent=1 // pred_check_branch
      %16 = sbr.rel (0) target = $region13
    $region12: #{yopo_final_forward.1} parent=1 // pred_region
      _
    $region13: #{yopo_final_forward.1} parent=1 // pred_fallthru
      _
    // Predicated region
    $region14: #{yopo_final_forward.1} parent=1 // pred_check
      _
    $region15: #{yopo_final_forward.1} parent=1 // pred_check_branch
      %18 = sbr.rel (0) target = $region17
    $region16: #{yopo_final_forward.1} parent=1 // pred_region
      _
    $region17: #{yopo_final_forward.1} parent=1 // pred_fallthru
      _
    // Predicated region
    $region18: #{yopo_final_forward.1} parent=1 // pred_check
      _
    $region19: #{yopo_final_forward.1} parent=1 // pred_check_branch
      %20 = sbr.rel (0) target = $region21
    $region20: #{yopo_final_forward.1} parent=1 // pred_region
      _
    $region21: #{yopo_final_forward.1} parent=1 // pred_fallthru
      _
    %p22 = scmp.eq.s32.totalorder 0, 0
    // Predicated region
    $region22: #{yopo_final_forward.1} parent=1 // pred_check
      %p23 = pneg %p22
    $region23: #{yopo_final_forward.1} parent=1 // pred_check_branch
      %25 = sbr.rel (%p23) target = $region25
    $region24: #{yopo_final_forward.1} parent=1 // pred_region
      %26 = vst [vmem:[#allocation2] sm:$0x3] -inf
    $region25: #{yopo_final_forward.1} parent=1 // pred_fallthru
      _
    %v27 = vld [vmem:[%s0] sm:$0xf]
    %v28 = vld [vmem:[%s0 + $0x4] sm:$0xf]
    %v29 = vld [vmem:[%s0 + $0x8] sm:$0xf]
    %v30 = vld [vmem:[%s0 + $0xc] sm:$0xf]
    %v31 = vld [vmem:[%s0 + $0x10] sm:$0xf]
    %v32 = vld [vmem:[%s0 + $0x14] sm:$0xf]
    %v33 = vld [vmem:[%s0 + $0x18] sm:$0xf]
    %v34 = vld [vmem:[%s0 + $0x1c] sm:$0xf]
    %v35 = vld [vmem:[%s0 + $0x20] sm:$0xf]
    %v36 = vld [vmem:[%s0 + $0x24] sm:$0xf]
    %v37 = vld [vmem:[%s0 + $0x28] sm:$0xf]
    %v38 = vld [vmem:[%s0 + $0x2c] sm:$0xf]
    %v39 = vld [vmem:[%s0 + $0x30] sm:$0xf]
    %v40 = vld [vmem:[%s0 + $0x34] sm:$0xf]
    %v41 = vld [vmem:[%s0 + $0x38] sm:$0xf]
    %v42 = vld [vmem:[%s0 + $0x3c] sm:$0xf]
    %v43 = vld [vmem:[%s0 + $0x40] sm:$0xf]
    %v44 = vld [vmem:[%s0 + $0x44] sm:$0xf]
    %v45 = vld [vmem:[%s0 + $0x48] sm:$0xf]
    %v46 = vld [vmem:[%s0 + $0x4c] sm:$0xf]
    %v47 = vld [vmem:[%s0 + $0x50] sm:$0xf]
    %v48 = vld [vmem:[%s0 + $0x54] sm:$0xf]
    %v49 = vld [vmem:[%s0 + $0x58] sm:$0xf]
    %v50 = vld [vmem:[%s0 + $0x5c] sm:$0xf]
    %v51 = vld [vmem:[%s0 + $0x60] sm:$0xf]
    %v52 = vld [vmem:[%s0 + $0x64] sm:$0xf]
    %v53 = vld [vmem:[%s0 + $0x68] sm:$0xf]
    %v54 = vld [vmem:[%s0 + $0x6c] sm:$0xf]
    %v55 = vld [vmem:[%s0 + $0x70] sm:$0xf]
    %v56 = vld [vmem:[%s0 + $0x74] sm:$0xf]
    %v57 = vld [vmem:[%s0 + $0x78] sm:$0xf]
    %v58 = vld [vmem:[%s0 + $0x7c] sm:$0xf]
    %v59 = vld [vmem:[%s0 + $0x80] sm:$0xf]
    %v60 = vld [vmem:[%s0 + $0x84] sm:$0xf]
    %v61 = vld [vmem:[%s0 + $0x88] sm:$0xf]
    %v62 = vld [vmem:[%s0 + $0x8c] sm:$0xf]
    %v63 = vld [vmem:[%s0 + $0x90] sm:$0xf]
    %v64 = vld [vmem:[%s0 + $0x94] sm:$0xf]
    %v65 = vld [vmem:[%s0 + $0x98] sm:$0xf]
    %v66 = vld [vmem:[%s0 + $0x9c] sm:$0xf]
    %v67 = vld [vmem:[%s0 + $0xa0] sm:$0xf]
    %v68 = vld [vmem:[%s0 + $0xa4] sm:$0xf]
    %v69 = vld [vmem:[%s0 + $0xa8] sm:$0xf]
    %v70 = vld [vmem:[%s0 + $0xac] sm:$0xf]
    %v71 = vld [vmem:[%s0 + $0xb0] sm:$0xf]
    %v72 = vld [vmem:[%s0 + $0xb4] sm:$0xf]
    %v73 = vld [vmem:[%s0 + $0xb8] sm:$0xf]
    %v74 = vld [vmem:[%s0 + $0xbc] sm:$0xf]
    %v75 = vld [vmem:[%s0 + $0xc0] sm:$0xf]
    %v76 = vld [vmem:[%s0 + $0xc4] sm:$0xf]
    %v77 = vld [vmem:[%s0 + $0xc8] sm:$0xf]
    %v78 = vld [vmem:[%s0 + $0xcc] sm:$0xf]
    %v79 = vld [vmem:[%s0 + $0xd0] sm:$0xf]
    %v80 = vld [vmem:[%s0 + $0xd4] sm:$0xf]
    %v81 = vld [vmem:[%s0 + $0xd8] sm:$0xf]
    %v82 = vld [vmem:[%s0 + $0xdc] sm:$0xf]
    %v83 = vld [vmem:[%s0 + $0xe0] sm:$0xf]
    %v84 = vld [vmem:[%s0 + $0xe4] sm:$0xf]
    %v85 = vld [vmem:[%s0 + $0xe8] sm:$0xf]
    %v86 = vld [vmem:[%s0 + $0xec] sm:$0xf]
    %v87 = vld [vmem:[%s0 + $0xf0] sm:$0xf]
    %v88 = vld [vmem:[%s0 + $0xf4] sm:$0xf]
    %v89 = vld [vmem:[%s0 + $0xf8] sm:$0xf]
    %v90 = vld [vmem:[%s0 + $0xfc] sm:$0xf]
    %v91 = vld [vmem:[%s1] sm:$0xf]
    %v92 = vld [vmem:[%s1 + $0x4] sm:$0xf]
    %v93 = vld [vmem:[%s1 + $0x8] sm:$0xf]
    %v94 = vld [vmem:[%s1 + $0xc] sm:$0xf]
    %v95 = vld [vmem:[%s1 + $0x10] sm:$0x3]
    %v96 = vld [vmem:[%s2] sm:$0x1]
    %v98 = vlaneseq
    %v99 = vshrl.u32 %v98, 7
    %v100 = vsub.s32 0, %v99
    %v101 = vrot.slane %v96, %v100
    %v167 = vunpack.c.l.b16 %v27
    %v168 = vunpack.c.l.b16 %v28
    %v169 = vunpack.c.l.b16 %v29
    %v170 = vunpack.c.l.b16 %v30
    %v171 = vunpack.c.l.b16 %v31
    %v172 = vunpack.c.l.b16 %v32
    %v173 = vunpack.c.l.b16 %v33
    %v174 = vunpack.c.l.b16 %v34
    %v175 = vunpack.c.l.b16 %v35
    %v176 = vunpack.c.l.b16 %v36
    %v177 = vunpack.c.l.b16 %v37
    %v178 = vunpack.c.l.b16 %v38
    %v179 = vunpack.c.l.b16 %v39
    %v180 = vunpack.c.l.b16 %v40
    %v181 = vunpack.c.l.b16 %v41
    %v182 = vunpack.c.l.b16 %v42
    %v183 = vunpack.c.l.b16 %v43
    %v184 = vunpack.c.l.b16 %v44
    %v185 = vunpack.c.l.b16 %v45
    %v186 = vunpack.c.l.b16 %v46
    %v187 = vunpack.c.l.b16 %v47
    %v188 = vunpack.c.l.b16 %v48
    %v189 = vunpack.c.l.b16 %v49
    %v190 = vunpack.c.l.b16 %v50
    %v191 = vunpack.c.l.b16 %v51
    %v192 = vunpack.c.l.b16 %v52
    %v193 = vunpack.c.l.b16 %v53
    %v194 = vunpack.c.l.b16 %v54
    %v195 = vunpack.c.l.b16 %v55
    %v196 = vunpack.c.l.b16 %v56
    %v197 = vunpack.c.l.b16 %v57
    %v198 = vunpack.c.l.b16 %v58
    %v199 = vunpack.c.l.b16 %v59
    %v200 = vunpack.c.l.b16 %v60
    %v201 = vunpack.c.l.b16 %v61
    %v202 = vunpack.c.l.b16 %v62
    %v203 = vunpack.c.l.b16 %v63
    %v204 = vunpack.c.l.b16 %v64
    %v205 = vunpack.c.l.b16 %v65
    %v206 = vunpack.c.l.b16 %v66
    %v207 = vunpack.c.l.b16 %v67
    %v208 = vunpack.c.l.b16 %v68
    %v209 = vunpack.c.l.b16 %v69
    %v210 = vunpack.c.l.b16 %v70
    %v211 = vunpack.c.l.b16 %v71
    %v212 = vunpack.c.l.b16 %v72
    %v213 = vunpack.c.l.b16 %v73
    %v214 = vunpack.c.l.b16 %v74
    %v215 = vunpack.c.l.b16 %v75
    %v216 = vunpack.c.l.b16 %v76
    %v217 = vunpack.c.l.b16 %v77
    %v218 = vunpack.c.l.b16 %v78
    %v219 = vunpack.c.l.b16 %v79
    %v220 = vunpack.c.l.b16 %v80
    %v221 = vunpack.c.l.b16 %v81
    %v222 = vunpack.c.l.b16 %v82
    %v223 = vunpack.c.l.b16 %v83
    %v224 = vunpack.c.l.b16 %v84
    %v225 = vunpack.c.l.b16 %v85
    %v226 = vunpack.c.l.b16 %v86
    %v227 = vunpack.c.l.b16 %v87
    %v228 = vunpack.c.l.b16 %v88
    %v229 = vunpack.c.l.b16 %v89
    %v230 = vunpack.c.l.b16 %v90
    %v231 = vpack.c.b16 %v168, %v167
    %v232 = vpack.c.b16 %v170, %v169
    %v233 = vpack.c.b16 %v172, %v171
    %v234 = vpack.c.b16 %v174, %v173
    %v235 = vpack.c.b16 %v176, %v175
    %v236 = vpack.c.b16 %v178, %v177
    %v237 = vpack.c.b16 %v180, %v179
    %v238 = vpack.c.b16 %v182, %v181
    %v239 = vpack.c.b16 %v184, %v183
    %v240 = vpack.c.b16 %v186, %v185
    %v241 = vpack.c.b16 %v188, %v187
    %v242 = vpack.c.b16 %v190, %v189
    %v243 = vpack.c.b16 %v192, %v191
    %v244 = vpack.c.b16 %v194, %v193
    %v245 = vpack.c.b16 %v196, %v195
    %v246 = vpack.c.b16 %v198, %v197
    %v247 = vpack.c.b16 %v200, %v199
    %v248 = vpack.c.b16 %v202, %v201
    %v249 = vpack.c.b16 %v204, %v203
    %v250 = vpack.c.b16 %v206, %v205
    %v251 = vpack.c.b16 %v208, %v207
    %v252 = vpack.c.b16 %v210, %v209
    %v253 = vpack.c.b16 %v212, %v211
    %v254 = vpack.c.b16 %v214, %v213
    %v255 = vpack.c.b16 %v216, %v215
    %v256 = vpack.c.b16 %v218, %v217
    %v257 = vpack.c.b16 %v220, %v219
    %v258 = vpack.c.b16 %v222, %v221
    %v259 = vpack.c.b16 %v224, %v223
    %v260 = vpack.c.b16 %v226, %v225
    %v261 = vpack.c.b16 %v228, %v227
    %v262 = vpack.c.b16 %v230, %v229
    %v268 = vunpack.c.l.b16 %v91
    %v269 = vunpack.c.l.b16 %v92
    %v270 = vunpack.c.l.b16 %v93
    %v271 = vunpack.c.l.b16 %v94
    %v272 = vunpack.c.l.b16 %v95
    %v273 = vpack.c.b16 %v269, %v268
    %v274 = vpack.c.b16 %v271, %v270
    %v275 = vpack.c.b16 %v272, %v272
    %vm278 = vcmask 293888
    %v280 = vsel %vm278, %v231, 0
    %v283 = vsel %vm278, %v232, 0
    %v286 = vsel %vm278, %v233, 0
    %v289 = vsel %vm278, %v234, 0
    %v292 = vsel %vm278, %v235, 0
    %v295 = vsel %vm278, %v236, 0
    %v298 = vsel %vm278, %v237, 0
    %v301 = vsel %vm278, %v238, 0
    %v304 = vsel %vm278, %v239, 0
    %v307 = vsel %vm278, %v240, 0
    %v310 = vsel %vm278, %v241, 0
    %v313 = vsel %vm278, %v242, 0
    %v316 = vsel %vm278, %v243, 0
    %v319 = vsel %vm278, %v244, 0
    %v322 = vsel %vm278, %v245, 0
    %v325 = vsel %vm278, %v246, 0
    %v328 = vsel %vm278, %v247, 0
    %v331 = vsel %vm278, %v248, 0
    %v334 = vsel %vm278, %v249, 0
    %v337 = vsel %vm278, %v250, 0
    %v340 = vsel %vm278, %v251, 0
    %v343 = vsel %vm278, %v252, 0
    %v346 = vsel %vm278, %v253, 0
    %v349 = vsel %vm278, %v254, 0
    %v352 = vsel %vm278, %v255, 0
    %v355 = vsel %vm278, %v256, 0
    %v358 = vsel %vm278, %v257, 0
    %v361 = vsel %vm278, %v258, 0
    %v364 = vsel %vm278, %v259, 0
    %v367 = vsel %vm278, %v260, 0
    %v370 = vsel %vm278, %v261, 0
    %v373 = vsel %vm278, %v262, 0
    %vm375 = vcmask 1041408
    %v377 = vsel %vm375, %v275, 0
    %379 = vmatprep.subr.bf16.mxu0 0
    %380 = vmatpush1.bf16.msra.mxu0 %v273
    %381 = vmatprep.subr.bf16.mxu0 0
    %382 = vmatpush1.bf16.msra.mxu0 %v274
    %383 = vmatprep.subr.bf16.mxu0 0
    %384 = vmatpush1.bf16.msra.mxu0 %v377
    %385 = vmatprep.subr.bf16.mxu0 0
    %386 = vmatpush1.bf16.msra.mxu0 0
    %387 = vmatprep.subr.bf16.mxu0 0
    %388 = vmatpush1.bf16.msra.mxu0 0
    %389 = vmatprep.subr.bf16.mxu0 0
    %390 = vmatpush1.bf16.msra.mxu0 0
    %391 = vmatprep.subr.bf16.mxu0 0
    %392 = vmatpush1.bf16.msra.mxu0 0
    %393 = vmatprep.subr.bf16.mxu0 0
    %394 = vmatpush1.bf16.msra.mxu0 0
    %395 = vmatprep.subr.bf16.mxu0 0
    %396 = vmatpush1.bf16.msra.mxu0 0
    %397 = vmatprep.subr.bf16.mxu0 0
    %398 = vmatpush1.bf16.msra.mxu0 0
    %399 = vmatprep.subr.bf16.mxu0 0
    %400 = vmatpush1.bf16.msra.mxu0 0
    %401 = vmatprep.subr.bf16.mxu0 0
    %402 = vmatpush1.bf16.msra.mxu0 0
    %403 = vmatprep.subr.bf16.mxu0 0
    %404 = vmatpush1.bf16.msra.mxu0 0
    %405 = vmatprep.subr.bf16.mxu0 0
    %406 = vmatpush1.bf16.msra.mxu0 0
    %407 = vmatprep.subr.bf16.mxu0 0
    %408 = vmatpush1.bf16.msra.mxu0 0
    %409 = vmatprep.subr.bf16.mxu0 0
    %410 = vmatpush1.bf16.msra.mxu0 0
    %411 = vmatprep.mubr.bf16.mxu0 0
    %412 = vmatmul.mubr.bf16.gmra.mrb[0].mxu0 %v280
    %v413 = vpop.f32.mrb[0].mxu0
    %v414 = vadd.f32 %v101, %v413
    %v415 = vpop.f32.mrb[0].mxu0
    %v416 = vpop.f32.mrb[0].mxu0
    %v417 = vadd.f32 %v101, %v416
    %v418 = vpop.f32.mrb[0].mxu0
    %419 = vmatprep.mubr.bf16.mxu0 0
    %420 = vmatmul.mubr.bf16.gmra.mrb[0].mxu0 %v283
    %v421 = vpop.f32.mrb[0].mxu0
    %v422 = vadd.f32 %v101, %v421
    %v423 = vpop.f32.mrb[0].mxu0
    %v424 = vpop.f32.mrb[0].mxu0
    %v425 = vadd.f32 %v101, %v424
    %v426 = vpop.f32.mrb[0].mxu0
    %427 = vmatprep.mubr.bf16.mxu0 0
    %428 = vmatmul.mubr.bf16.gmra.mrb[0].mxu0 %v286
    %v429 = vpop.f32.mrb[0].mxu0
    %v430 = vadd.f32 %v101, %v429
    %v431 = vpop.f32.mrb[0].mxu0
    %v432 = vpop.f32.mrb[0].mxu0
    %v433 = vadd.f32 %v101, %v432
    %v434 = vpop.f32.mrb[0].mxu0
    %435 = vmatprep.mubr.bf16.mxu0 0
    %436 = vmatmul.mubr.bf16.gmra.mrb[0].mxu0 %v289
    %v437 = vpop.f32.mrb[0].mxu0
    %v438 = vadd.f32 %v101, %v437
    %v439 = vpop.f32.mrb[0].mxu0
    %v440 = vpop.f32.mrb[0].mxu0
    %v441 = vadd.f32 %v101, %v440
    %v442 = vpop.f32.mrb[0].mxu0
    %443 = vmatprep.mubr.bf16.mxu0 0
    %444 = vmatmul.mubr.bf16.gmra.mrb[0].mxu0 %v292
    %v445 = vpop.f32.mrb[0].mxu0
    %v446 = vadd.f32 %v101, %v445
    %v447 = vpop.f32.mrb[0].mxu0
    %v448 = vpop.f32.mrb[0].mxu0
    %v449 = vadd.f32 %v101, %v448
    %v450 = vpop.f32.mrb[0].mxu0
    %451 = vmatprep.mubr.bf16.mxu0 0
    %452 = vmatmul.mubr.bf16.gmra.mrb[0].mxu0 %v295
    %v453 = vpop.f32.mrb[0].mxu0
    %v454 = vadd.f32 %v101, %v453
    %v455 = vpop.f32.mrb[0].mxu0
    %v456 = vpop.f32.mrb[0].mxu0
    %v457 = vadd.f32 %v101, %v456
    %v458 = vpop.f32.mrb[0].mxu0
    %459 = vmatprep.mubr.bf16.mxu0 0
    %460 = vmatmul.mubr.bf16.gmra.mrb[0].mxu0 %v298
    %v461 = vpop.f32.mrb[0].mxu0
    %v462 = vadd.f32 %v101, %v461
    %v463 = vpop.f32.mrb[0].mxu0
    %v464 = vpop.f32.mrb[0].mxu0
    %v465 = vadd.f32 %v101, %v464
    %v466 = vpop.f32.mrb[0].mxu0
    %467 = vmatprep.mubr.bf16.mxu0 0
    %468 = vmatmul.mubr.bf16.gmra.mrb[0].mxu0 %v301
    %v469 = vpop.f32.mrb[0].mxu0
    %v470 = vadd.f32 %v101, %v469
    %v471 = vpop.f32.mrb[0].mxu0
    %v472 = vpop.f32.mrb[0].mxu0
    %v473 = vadd.f32 %v101, %v472
    %v474 = vpop.f32.mrb[0].mxu0
    %475 = vmatprep.mubr.bf16.mxu0 0
    %476 = vmatmul.mubr.bf16.gmra.mrb[0].mxu0 %v304
    %v477 = vpop.f32.mrb[0].mxu0
    %v478 = vadd.f32 %v101, %v477
    %v479 = vpop.f32.mrb[0].mxu0
    %v480 = vpop.f32.mrb[0].mxu0
    %v481 = vadd.f32 %v101, %v480
    %v482 = vpop.f32.mrb[0].mxu0
    %483 = vmatprep.mubr.bf16.mxu0 0
    %484 = vmatmul.mubr.bf16.gmra.mrb[0].mxu0 %v307
    %v485 = vpop.f32.mrb[0].mxu0
    %v486 = vadd.f32 %v101, %v485
    %v487 = vpop.f32.mrb[0].mxu0
    %v488 = vpop.f32.mrb[0].mxu0
    %v489 = vadd.f32 %v101, %v488
    %v490 = vpop.f32.mrb[0].mxu0
    %491 = vmatprep.mubr.bf16.mxu0 0
    %492 = vmatmul.mubr.bf16.gmra.mrb[0].mxu0 %v310
    %v493 = vpop.f32.mrb[0].mxu0
    %v494 = vadd.f32 %v101, %v493
    %v495 = vpop.f32.mrb[0].mxu0
    %v496 = vpop.f32.mrb[0].mxu0
    %v497 = vadd.f32 %v101, %v496
    %v498 = vpop.f32.mrb[0].mxu0
    %499 = vmatprep.mubr.bf16.mxu0 0
    %500 = vmatmul.mubr.bf16.gmra.mrb[0].mxu0 %v313
    %v501 = vpop.f32.mrb[0].mxu0
    %v502 = vadd.f32 %v101, %v501
    %v503 = vpop.f32.mrb[0].mxu0
    %v504 = vpop.f32.mrb[0].mxu0
    %v505 = vadd.f32 %v101, %v504
    %v506 = vpop.f32.mrb[0].mxu0
    %507 = vmatprep.mubr.bf16.mxu0 0
    %508 = vmatmul.mubr.bf16.gmra.mrb[0].mxu0 %v316
    %v509 = vpop.f32.mrb[0].mxu0
    %v510 = vadd.f32 %v101, %v509
    %v511 = vpop.f32.mrb[0].mxu0
    %v512 = vpop.f32.mrb[0].mxu0
    %v513 = vadd.f32 %v101, %v512
    %v514 = vpop.f32.mrb[0].mxu0
    %515 = vmatprep.mubr.bf16.mxu0 0
    %516 = vmatmul.mubr.bf16.gmra.mrb[0].mxu0 %v319
    %v517 = vpop.f32.mrb[0].mxu0
    %v518 = vadd.f32 %v101, %v517
    %v519 = vpop.f32.mrb[0].mxu0
    %v520 = vpop.f32.mrb[0].mxu0
    %v521 = vadd.f32 %v101, %v520
    %v522 = vpop.f32.mrb[0].mxu0
    %523 = vmatprep.mubr.bf16.mxu0 0
    %524 = vmatmul.mubr.bf16.gmra.mrb[0].mxu0 %v322
    %v525 = vpop.f32.mrb[0].mxu0
    %v526 = vadd.f32 %v101, %v525
    %v527 = vpop.f32.mrb[0].mxu0
    %v528 = vpop.f32.mrb[0].mxu0
    %v529 = vadd.f32 %v101, %v528
    %v530 = vpop.f32.mrb[0].mxu0
    %531 = vmatprep.mubr.bf16.mxu0 0
    %532 = vmatmul.mubr.bf16.gmra.mrb[0].mxu0 %v325
    %v533 = vpop.f32.mrb[0].mxu0
    %v534 = vadd.f32 %v101, %v533
    %v535 = vpop.f32.mrb[0].mxu0
    %v536 = vpop.f32.mrb[0].mxu0
    %v537 = vadd.f32 %v101, %v536
    %v538 = vpop.f32.mrb[0].mxu0
    %539 = vmatprep.mubr.bf16.mxu0 0
    %540 = vmatmul.mubr.bf16.gmra.mrb[0].mxu0 %v328
    %v541 = vpop.f32.mrb[0].mxu0
    %v542 = vadd.f32 %v101, %v541
    %v543 = vpop.f32.mrb[0].mxu0
    %v544 = vpop.f32.mrb[0].mxu0
    %v545 = vadd.f32 %v101, %v544
    %v546 = vpop.f32.mrb[0].mxu0
    %547 = vmatprep.mubr.bf16.mxu0 0
    %548 = vmatmul.mubr.bf16.gmra.mrb[0].mxu0 %v331
    %v549 = vpop.f32.mrb[0].mxu0
    %v550 = vadd.f32 %v101, %v549
    %v551 = vpop.f32.mrb[0].mxu0
    %v552 = vpop.f32.mrb[0].mxu0
    %v553 = vadd.f32 %v101, %v552
    %v554 = vpop.f32.mrb[0].mxu0
    %555 = vmatprep.mubr.bf16.mxu0 0
    %556 = vmatmul.mubr.bf16.gmra.mrb[0].mxu0 %v334
    %v557 = vpop.f32.mrb[0].mxu0
    %v558 = vadd.f32 %v101, %v557
    %v559 = vpop.f32.mrb[0].mxu0
    %v560 = vpop.f32.mrb[0].mxu0
    %v561 = vadd.f32 %v101, %v560
    %v562 = vpop.f32.mrb[0].mxu0
    %563 = vmatprep.mubr.bf16.mxu0 0
    %564 = vmatmul.mubr.bf16.gmra.mrb[0].mxu0 %v337
    %v565 = vpop.f32.mrb[0].mxu0
    %v566 = vadd.f32 %v101, %v565
    %v567 = vpop.f32.mrb[0].mxu0
    %v568 = vpop.f32.mrb[0].mxu0
    %v569 = vadd.f32 %v101, %v568
    %v570 = vpop.f32.mrb[0].mxu0
    %571 = vmatprep.mubr.bf16.mxu0 0
    %572 = vmatmul.mubr.bf16.gmra.mrb[0].mxu0 %v340
    %v573 = vpop.f32.mrb[0].mxu0
    %v574 = vadd.f32 %v101, %v573
    %v575 = vpop.f32.mrb[0].mxu0
    %v576 = vpop.f32.mrb[0].mxu0
    %v577 = vadd.f32 %v101, %v576
    %v578 = vpop.f32.mrb[0].mxu0
    %579 = vmatprep.mubr.bf16.mxu0 0
    %580 = vmatmul.mubr.bf16.gmra.mrb[0].mxu0 %v343
    %v581 = vpop.f32.mrb[0].mxu0
    %v582 = vadd.f32 %v101, %v581
    %v583 = vpop.f32.mrb[0].mxu0
    %v584 = vpop.f32.mrb[0].mxu0
    %v585 = vadd.f32 %v101, %v584
    %v586 = vpop.f32.mrb[0].mxu0
    %587 = vmatprep.mubr.bf16.mxu0 0
    %588 = vmatmul.mubr.bf16.gmra.mrb[0].mxu0 %v346
    %v589 = vpop.f32.mrb[0].mxu0
    %v590 = vadd.f32 %v101, %v589
    %v591 = vpop.f32.mrb[0].mxu0
    %v592 = vpop.f32.mrb[0].mxu0
    %v593 = vadd.f32 %v101, %v592
    %v594 = vpop.f32.mrb[0].mxu0
    %595 = vmatprep.mubr.bf16.mxu0 0
    %596 = vmatmul.mubr.bf16.gmra.mrb[0].mxu0 %v349
    %v597 = vpop.f32.mrb[0].mxu0
    %v598 = vadd.f32 %v101, %v597
    %v599 = vpop.f32.mrb[0].mxu0
    %v600 = vpop.f32.mrb[0].mxu0
    %v601 = vadd.f32 %v101, %v600
    %v602 = vpop.f32.mrb[0].mxu0
    %603 = vmatprep.mubr.bf16.mxu0 0
    %604 = vmatmul.mubr.bf16.gmra.mrb[0].mxu0 %v352
    %v605 = vpop.f32.mrb[0].mxu0
    %v606 = vadd.f32 %v101, %v605
    %v607 = vpop.f32.mrb[0].mxu0
    %v608 = vpop.f32.mrb[0].mxu0
    %v609 = vadd.f32 %v101, %v608
    %v610 = vpop.f32.mrb[0].mxu0
    %611 = vmatprep.mubr.bf16.mxu0 0
    %612 = vmatmul.mubr.bf16.gmra.mrb[0].mxu0 %v355
    %v613 = vpop.f32.mrb[0].mxu0
    %v614 = vadd.f32 %v101, %v613
    %v615 = vpop.f32.mrb[0].mxu0
    %v616 = vpop.f32.mrb[0].mxu0
    %v617 = vadd.f32 %v101, %v616
    %v618 = vpop.f32.mrb[0].mxu0
    %619 = vmatprep.mubr.bf16.mxu0 0
    %620 = vmatmul.mubr.bf16.gmra.mrb[0].mxu0 %v358
    %v621 = vpop.f32.mrb[0].mxu0
    %v622 = vadd.f32 %v101, %v621
    %v623 = vpop.f32.mrb[0].mxu0
    %v624 = vpop.f32.mrb[0].mxu0
    %v625 = vadd.f32 %v101, %v624
    %v626 = vpop.f32.mrb[0].mxu0
    %627 = vmatprep.mubr.bf16.mxu0 0
    %628 = vmatmul.mubr.bf16.gmra.mrb[0].mxu0 %v361
    %v629 = vpop.f32.mrb[0].mxu0
    %v630 = vadd.f32 %v101, %v629
    %v631 = vpop.f32.mrb[0].mxu0
    %v632 = vpop.f32.mrb[0].mxu0
    %v633 = vadd.f32 %v101, %v632
    %v634 = vpop.f32.mrb[0].mxu0
    %635 = vmatprep.mubr.bf16.mxu0 0
    %636 = vmatmul.mubr.bf16.gmra.mrb[0].mxu0 %v364
    %v637 = vpop.f32.mrb[0].mxu0
    %v638 = vadd.f32 %v101, %v637
    %v639 = vpop.f32.mrb[0].mxu0
    %v640 = vpop.f32.mrb[0].mxu0
    %v641 = vadd.f32 %v101, %v640
    %v642 = vpop.f32.mrb[0].mxu0
    %643 = vmatprep.mubr.bf16.mxu0 0
    %644 = vmatmul.mubr.bf16.gmra.mrb[0].mxu0 %v367
    %v645 = vpop.f32.mrb[0].mxu0
    %v646 = vadd.f32 %v101, %v645
    %v647 = vpop.f32.mrb[0].mxu0
    %v648 = vpop.f32.mrb[0].mxu0
    %v649 = vadd.f32 %v101, %v648
    %v650 = vpop.f32.mrb[0].mxu0
    %651 = vmatprep.mubr.bf16.mxu0 0
    %652 = vmatmul.mubr.bf16.gmra.mrb[0].mxu0 %v370
    %v653 = vpop.f32.mrb[0].mxu0
    %v654 = vadd.f32 %v101, %v653
    %v655 = vpop.f32.mrb[0].mxu0
    %v656 = vpop.f32.mrb[0].mxu0
    %v657 = vadd.f32 %v101, %v656
    %v658 = vpop.f32.mrb[0].mxu0
    %659 = vmatprep.mubr.bf16.mxu0 0
    %660 = vmatmul.mubr.bf16.gmra.mrb[0].mxu0 %v373
    %v661 = vpop.f32.mrb[0].mxu0
    %v662 = vadd.f32 %v101, %v661
    %v663 = vpop.f32.mrb[0].mxu0
    %v664 = vpop.f32.mrb[0].mxu0
    %v665 = vadd.f32 %v101, %v664
    %v666 = vpop.f32.mrb[0].mxu0
    %667 = vdwg.mxu0
    %vm668 = vcmp.gt.f32.partialorder %v414, 0.0
    %vm669 = vcmp.gt.f32.partialorder %v417, 0.0
    %vm670 = vcmp.gt.f32.partialorder %v422, 0.0
    %vm671 = vcmp.gt.f32.partialorder %v425, 0.0
    %vm672 = vcmp.gt.f32.partialorder %v430, 0.0
    %vm673 = vcmp.gt.f32.partialorder %v433, 0.0
    %vm674 = vcmp.gt.f32.partialorder %v438, 0.0
    %vm675 = vcmp.gt.f32.partialorder %v441, 0.0
    %vm676 = vcmp.gt.f32.partialorder %v446, 0.0
    %vm677 = vcmp.gt.f32.partialorder %v449, 0.0
    %vm678 = vcmp.gt.f32.partialorder %v454, 0.0
    %vm679 = vcmp.gt.f32.partialorder %v457, 0.0
    %vm680 = vcmp.gt.f32.partialorder %v462, 0.0
    %vm681 = vcmp.gt.f32.partialorder %v465, 0.0
    %vm682 = vcmp.gt.f32.partialorder %v470, 0.0
    %vm683 = vcmp.gt.f32.partialorder %v473, 0.0
    %vm684 = vcmp.gt.f32.partialorder %v478, 0.0
    %vm685 = vcmp.gt.f32.partialorder %v481, 0.0
    %vm686 = vcmp.gt.f32.partialorder %v486, 0.0
    %vm687 = vcmp.gt.f32.partialorder %v489, 0.0
    %vm688 = vcmp.gt.f32.partialorder %v494, 0.0
    %vm689 = vcmp.gt.f32.partialorder %v497, 0.0
    %vm690 = vcmp.gt.f32.partialorder %v502, 0.0
    %vm691 = vcmp.gt.f32.partialorder %v505, 0.0
    %vm692 = vcmp.gt.f32.partialorder %v510, 0.0
    %vm693 = vcmp.gt.f32.partialorder %v513, 0.0
    %vm694 = vcmp.gt.f32.partialorder %v518, 0.0
    %vm695 = vcmp.gt.f32.partialorder %v521, 0.0
    %vm696 = vcmp.gt.f32.partialorder %v526, 0.0
    %vm697 = vcmp.gt.f32.partialorder %v529, 0.0
    %vm698 = vcmp.gt.f32.partialorder %v534, 0.0
    %vm699 = vcmp.gt.f32.partialorder %v537, 0.0
    %vm700 = vcmp.gt.f32.partialorder %v542, 0.0
    %vm701 = vcmp.gt.f32.partialorder %v545, 0.0
    %vm702 = vcmp.gt.f32.partialorder %v550, 0.0
    %vm703 = vcmp.gt.f32.partialorder %v553, 0.0
    %vm704 = vcmp.gt.f32.partialorder %v558, 0.0
    %vm705 = vcmp.gt.f32.partialorder %v561, 0.0
    %vm706 = vcmp.gt.f32.partialorder %v566, 0.0
    %vm707 = vcmp.gt.f32.partialorder %v569, 0.0
    %vm708 = vcmp.gt.f32.partialorder %v574, 0.0
    %vm709 = vcmp.gt.f32.partialorder %v577, 0.0
    %vm710 = vcmp.gt.f32.partialorder %v582, 0.0
    %vm711 = vcmp.gt.f32.partialorder %v585, 0.0
    %vm712 = vcmp.gt.f32.partialorder %v590, 0.0
    %vm713 = vcmp.gt.f32.partialorder %v593, 0.0
    %vm714 = vcmp.gt.f32.partialorder %v598, 0.0
    %vm715 = vcmp.gt.f32.partialorder %v601, 0.0
    %vm716 = vcmp.gt.f32.partialorder %v606, 0.0
    %vm717 = vcmp.gt.f32.partialorder %v609, 0.0
    %vm718 = vcmp.gt.f32.partialorder %v614, 0.0
    %vm719 = vcmp.gt.f32.partialorder %v617, 0.0
    %vm720 = vcmp.gt.f32.partialorder %v622, 0.0
    %vm721 = vcmp.gt.f32.partialorder %v625, 0.0
    %vm722 = vcmp.gt.f32.partialorder %v630, 0.0
    %vm723 = vcmp.gt.f32.partialorder %v633, 0.0
    %vm724 = vcmp.gt.f32.partialorder %v638, 0.0
    %vm725 = vcmp.gt.f32.partialorder %v641, 0.0
    %vm726 = vcmp.gt.f32.partialorder %v646, 0.0
    %vm727 = vcmp.gt.f32.partialorder %v649, 0.0
    %vm728 = vcmp.gt.f32.partialorder %v654, 0.0
    %vm729 = vcmp.gt.f32.partialorder %v657, 0.0
    %vm730 = vcmp.gt.f32.partialorder %v662, 0.0
    %vm731 = vcmp.gt.f32.partialorder %v665, 0.0
    %v732 = vmin.f32 %v414, 0.0
    %v733 = vmin.f32 %v417, 0.0
    %v734 = vmin.f32 %v422, 0.0
    %v735 = vmin.f32 %v425, 0.0
    %v736 = vmin.f32 %v430, 0.0
    %v737 = vmin.f32 %v433, 0.0
    %v738 = vmin.f32 %v438, 0.0
    %v739 = vmin.f32 %v441, 0.0
    %v740 = vmin.f32 %v446, 0.0
    %v741 = vmin.f32 %v449, 0.0
    %v742 = vmin.f32 %v454, 0.0
    %v743 = vmin.f32 %v457, 0.0
    %v744 = vmin.f32 %v462, 0.0
    %v745 = vmin.f32 %v465, 0.0
    %v746 = vmin.f32 %v470, 0.0
    %v747 = vmin.f32 %v473, 0.0
    %v748 = vmin.f32 %v478, 0.0
    %v749 = vmin.f32 %v481, 0.0
    %v750 = vmin.f32 %v486, 0.0
    %v751 = vmin.f32 %v489, 0.0
    %v752 = vmin.f32 %v494, 0.0
    %v753 = vmin.f32 %v497, 0.0
    %v754 = vmin.f32 %v502, 0.0
    %v755 = vmin.f32 %v505, 0.0
    %v756 = vmin.f32 %v510, 0.0
    %v757 = vmin.f32 %v513, 0.0
    %v758 = vmin.f32 %v518, 0.0
    %v759 = vmin.f32 %v521, 0.0
    %v760 = vmin.f32 %v526, 0.0
    %v761 = vmin.f32 %v529, 0.0
    %v762 = vmin.f32 %v534, 0.0
    %v763 = vmin.f32 %v537, 0.0
    %v764 = vmin.f32 %v542, 0.0
    %v765 = vmin.f32 %v545, 0.0
    %v766 = vmin.f32 %v550, 0.0
    %v767 = vmin.f32 %v553, 0.0
    %v768 = vmin.f32 %v558, 0.0
    %v769 = vmin.f32 %v561, 0.0
    %v770 = vmin.f32 %v566, 0.0
    %v771 = vmin.f32 %v569, 0.0
    %v772 = vmin.f32 %v574, 0.0
    %v773 = vmin.f32 %v577, 0.0
    %v774 = vmin.f32 %v582, 0.0
    %v775 = vmin.f32 %v585, 0.0
    %v776 = vmin.f32 %v590, 0.0
    %v777 = vmin.f32 %v593, 0.0
    %v778 = vmin.f32 %v598, 0.0
    %v779 = vmin.f32 %v601, 0.0
    %v780 = vmin.f32 %v606, 0.0
    %v781 = vmin.f32 %v609, 0.0
    %v782 = vmin.f32 %v614, 0.0
    %v783 = vmin.f32 %v617, 0.0
    %v784 = vmin.f32 %v622, 0.0
    %v785 = vmin.f32 %v625, 0.0
    %v786 = vmin.f32 %v630, 0.0
    %v787 = vmin.f32 %v633, 0.0
    %v788 = vmin.f32 %v638, 0.0
    %v789 = vmin.f32 %v641, 0.0
    %v790 = vmin.f32 %v646, 0.0
    %v791 = vmin.f32 %v649, 0.0
    %v792 = vmin.f32 %v654, 0.0
    %v793 = vmin.f32 %v657, 0.0
    %v794 = vmin.f32 %v662, 0.0
    %v795 = vmin.f32 %v665, 0.0
    %v796 = vmul.f32 %v732, 0.5
    %v797 = vmul.f32 %v733, 0.5
    %v798 = vmul.f32 %v734, 0.5
    %v799 = vmul.f32 %v735, 0.5
    %v800 = vmul.f32 %v736, 0.5
    %v801 = vmul.f32 %v737, 0.5
    %v802 = vmul.f32 %v738, 0.5
    %v803 = vmul.f32 %v739, 0.5
    %v804 = vmul.f32 %v740, 0.5
    %v805 = vmul.f32 %v741, 0.5
    %v806 = vmul.f32 %v742, 0.5
    %v807 = vmul.f32 %v743, 0.5
    %v808 = vmul.f32 %v744, 0.5
    %v809 = vmul.f32 %v745, 0.5
    %v810 = vmul.f32 %v746, 0.5
    %v811 = vmul.f32 %v747, 0.5
    %v812 = vmul.f32 %v748, 0.5
    %v813 = vmul.f32 %v749, 0.5
    %v814 = vmul.f32 %v750, 0.5
    %v815 = vmul.f32 %v751, 0.5
    %v816 = vmul.f32 %v752, 0.5
    %v817 = vmul.f32 %v753, 0.5
    %v818 = vmul.f32 %v754, 0.5
    %v819 = vmul.f32 %v755, 0.5
    %v820 = vmul.f32 %v756, 0.5
    %v821 = vmul.f32 %v757, 0.5
    %v822 = vmul.f32 %v758, 0.5
    %v823 = vmul.f32 %v759, 0.5
    %v824 = vmul.f32 %v760, 0.5
    %v825 = vmul.f32 %v761, 0.5
    %v826 = vmul.f32 %v762, 0.5
    %v827 = vmul.f32 %v763, 0.5
    %v828 = vmul.f32 %v764, 0.5
    %v829 = vmul.f32 %v765, 0.5
    %v830 = vmul.f32 %v766, 0.5
    %v831 = vmul.f32 %v767, 0.5
    %v832 = vmul.f32 %v768, 0.5
    %v833 = vmul.f32 %v769, 0.5
    %v834 = vmul.f32 %v770, 0.5
    %v835 = vmul.f32 %v771, 0.5
    %v836 = vmul.f32 %v772, 0.5
    %v837 = vmul.f32 %v773, 0.5
    %v838 = vmul.f32 %v774, 0.5
    %v839 = vmul.f32 %v775, 0.5
    %v840 = vmul.f32 %v776, 0.5
    %v841 = vmul.f32 %v777, 0.5
    %v842 = vmul.f32 %v778, 0.5
    %v843 = vmul.f32 %v779, 0.5
    %v844 = vmul.f32 %v780, 0.5
    %v845 = vmul.f32 %v781, 0.5
    %v846 = vmul.f32 %v782, 0.5
    %v847 = vmul.f32 %v783, 0.5
    %v848 = vmul.f32 %v784, 0.5
    %v849 = vmul.f32 %v785, 0.5
    %v850 = vmul.f32 %v786, 0.5
    %v851 = vmul.f32 %v787, 0.5
    %v852 = vmul.f32 %v788, 0.5
    %v853 = vmul.f32 %v789, 0.5
    %v854 = vmul.f32 %v790, 0.5
    %v855 = vmul.f32 %v791, 0.5
    %v856 = vmul.f32 %v792, 0.5
    %v857 = vmul.f32 %v793, 0.5
    %v858 = vmul.f32 %v794, 0.5
    %v859 = vmul.f32 %v795, 0.5
    %v860 = vtanh.pop %v796
    %v861 = vtanh.pop %v797
    %v862 = vtanh.pop %v798
    %v863 = vtanh.pop %v799
    %v864 = vtanh.pop %v800
    %v865 = vtanh.pop %v801
    %v866 = vtanh.pop %v802
    %v867 = vtanh.pop %v803
    %v868 = vtanh.pop %v804
    %v869 = vtanh.pop %v805
    %v870 = vtanh.pop %v806
    %v871 = vtanh.pop %v807
    %v872 = vtanh.pop %v808
    %v873 = vtanh.pop %v809
    %v874 = vtanh.pop %v810
    %v875 = vtanh.pop %v811
    %v876 = vtanh.pop %v812
    %v877 = vtanh.pop %v813
    %v878 = vtanh.pop %v814
    %v879 = vtanh.pop %v815
    %v880 = vtanh.pop %v816
    %v881 = vtanh.pop %v817
    %v882 = vtanh.pop %v818
    %v883 = vtanh.pop %v819
    %v884 = vtanh.pop %v820
    %v885 = vtanh.pop %v821
    %v886 = vtanh.pop %v822
    %v887 = vtanh.pop %v823
    %v888 = vtanh.pop %v824
    %v889 = vtanh.pop %v825
    %v890 = vtanh.pop %v826
    %v891 = vtanh.pop %v827
    %v892 = vtanh.pop %v828
    %v893 = vtanh.pop %v829
    %v894 = vtanh.pop %v830
    %v895 = vtanh.pop %v831
    %v896 = vtanh.pop %v832
    %v897 = vtanh.pop %v833
    %v898 = vtanh.pop %v834
    %v899 = vtanh.pop %v835
    %v900 = vtanh.pop %v836
    %v901 = vtanh.pop %v837
    %v902 = vtanh.pop %v838
    %v903 = vtanh.pop %v839
    %v904 = vtanh.pop %v840
    %v905 = vtanh.pop %v841
    %v906 = vtanh.pop %v842
    %v907 = vtanh.pop %v843
    %v908 = vtanh.pop %v844
    %v909 = vtanh.pop %v845
    %v910 = vtanh.pop %v846
    %v911 = vtanh.pop %v847
    %v912 = vtanh.pop %v848
    %v913 = vtanh.pop %v849
    %v914 = vtanh.pop %v850
    %v915 = vtanh.pop %v851
    %v916 = vtanh.pop %v852
    %v917 = vtanh.pop %v853
    %v918 = vtanh.pop %v854
    %v919 = vtanh.pop %v855
    %v920 = vtanh.pop %v856
    %v921 = vtanh.pop %v857
    %v922 = vtanh.pop %v858
    %v923 = vtanh.pop %v859
    %v924 = vmul.f32 %v732, 1.442695
    %v925 = vpow.pop %v924
    %v926 = vmul.f32 %v733, 1.442695
    %v927 = vpow.pop %v926
    %v928 = vmul.f32 %v734, 1.442695
    %v929 = vpow.pop %v928
    %v930 = vmul.f32 %v735, 1.442695
    %v931 = vpow.pop %v930
    %v932 = vmul.f32 %v736, 1.442695
    %v933 = vpow.pop %v932
    %v934 = vmul.f32 %v737, 1.442695
    %v935 = vpow.pop %v934
    %v936 = vmul.f32 %v738, 1.442695
    %v937 = vpow.pop %v936
    %v938 = vmul.f32 %v739, 1.442695
    %v939 = vpow.pop %v938
    %v940 = vmul.f32 %v740, 1.442695
    %v941 = vpow.pop %v940
    %v942 = vmul.f32 %v741, 1.442695
    %v943 = vpow.pop %v942
    %v944 = vmul.f32 %v742, 1.442695
    %v945 = vpow.pop %v944
    %v946 = vmul.f32 %v743, 1.442695
    %v947 = vpow.pop %v946
    %v948 = vmul.f32 %v744, 1.442695
    %v949 = vpow.pop %v948
    %v950 = vmul.f32 %v745, 1.442695
    %v951 = vpow.pop %v950
    %v952 = vmul.f32 %v746, 1.442695
    %v953 = vpow.pop %v952
    %v954 = vmul.f32 %v747, 1.442695
    %v955 = vpow.pop %v954
    %v956 = vmul.f32 %v748, 1.442695
    %v957 = vpow.pop %v956
    %v958 = vmul.f32 %v749, 1.442695
    %v959 = vpow.pop %v958
    %v960 = vmul.f32 %v750, 1.442695
    %v961 = vpow.pop %v960
    %v962 = vmul.f32 %v751, 1.442695
    %v963 = vpow.pop %v962
    %v964 = vmul.f32 %v752, 1.442695
    %v965 = vpow.pop %v964
    %v966 = vmul.f32 %v753, 1.442695
    %v967 = vpow.pop %v966
    %v968 = vmul.f32 %v754, 1.442695
    %v969 = vpow.pop %v968
    %v970 = vmul.f32 %v755, 1.442695
    %v971 = vpow.pop %v970
    %v972 = vmul.f32 %v756, 1.442695
    %v973 = vpow.pop %v972
    %v974 = vmul.f32 %v757, 1.442695
    %v975 = vpow.pop %v974
    %v976 = vmul.f32 %v758, 1.442695
    %v977 = vpow.pop %v976
    %v978 = vmul.f32 %v759, 1.442695
    %v979 = vpow.pop %v978
    %v980 = vmul.f32 %v760, 1.442695
    %v981 = vpow.pop %v980
    %v982 = vmul.f32 %v761, 1.442695
    %v983 = vpow.pop %v982
    %v984 = vmul.f32 %v762, 1.442695
    %v985 = vpow.pop %v984
    %v986 = vmul.f32 %v763, 1.442695
    %v987 = vpow.pop %v986
    %v988 = vmul.f32 %v764, 1.442695
    %v989 = vpow.pop %v988
    %v990 = vmul.f32 %v765, 1.442695
    %v991 = vpow.pop %v990
    %v992 = vmul.f32 %v766, 1.442695
    %v993 = vpow.pop %v992
    %v994 = vmul.f32 %v767, 1.442695
    %v995 = vpow.pop %v994
    %v996 = vmul.f32 %v768, 1.442695
    %v997 = vpow.pop %v996
    %v998 = vmul.f32 %v769, 1.442695
    %v999 = vpow.pop %v998
    %v1000 = vmul.f32 %v770, 1.442695
    %v1001 = vpow.pop %v1000
    %v1002 = vmul.f32 %v771, 1.442695
    %v1003 = vpow.pop %v1002
    %v1004 = vmul.f32 %v772, 1.442695
    %v1005 = vpow.pop %v1004
    %v1006 = vmul.f32 %v773, 1.442695
    %v1007 = vpow.pop %v1006
    %v1008 = vmul.f32 %v774, 1.442695
    %v1009 = vpow.pop %v1008
    %v1010 = vmul.f32 %v775, 1.442695
    %v1011 = vpow.pop %v1010
    %v1012 = vmul.f32 %v776, 1.442695
    %v1013 = vpow.pop %v1012
    %v1014 = vmul.f32 %v777, 1.442695
    %v1015 = vpow.pop %v1014
    %v1016 = vmul.f32 %v778, 1.442695
    %v1017 = vpow.pop %v1016
    %v1018 = vmul.f32 %v779, 1.442695
    %v1019 = vpow.pop %v1018
    %v1020 = vmul.f32 %v780, 1.442695
    %v1021 = vpow.pop %v1020
    %v1022 = vmul.f32 %v781, 1.442695
    %v1023 = vpow.pop %v1022
    %v1024 = vmul.f32 %v782, 1.442695
    %v1025 = vpow.pop %v1024
    %v1026 = vmul.f32 %v783, 1.442695
    %v1027 = vpow.pop %v1026
    %v1028 = vmul.f32 %v784, 1.442695
    %v1029 = vpow.pop %v1028
    %v1030 = vmul.f32 %v785, 1.442695
    %v1031 = vpow.pop %v1030
    %v1032 = vmul.f32 %v786, 1.442695
    %v1033 = vpow.pop %v1032
    %v1034 = vmul.f32 %v787, 1.442695
    %v1035 = vpow.pop %v1034
    %v1036 = vmul.f32 %v788, 1.442695
    %v1037 = vpow.pop %v1036
    %v1038 = vmul.f32 %v789, 1.442695
    %v1039 = vpow.pop %v1038
    %v1040 = vmul.f32 %v790, 1.442695
    %v1041 = vpow.pop %v1040
    %v1042 = vmul.f32 %v791, 1.442695
    %v1043 = vpow.pop %v1042
    %v1044 = vmul.f32 %v792, 1.442695
    %v1045 = vpow.pop %v1044
    %v1046 = vmul.f32 %v793, 1.442695
    %v1047 = vpow.pop %v1046
    %v1048 = vmul.f32 %v794, 1.442695
    %v1049 = vpow.pop %v1048
    %v1050 = vmul.f32 %v795, 1.442695
    %v1051 = vpow.pop %v1050
    %v1052 = vadd.f32 %v925, 1.0
    %v1053 = vadd.f32 %v927, 1.0
    %v1054 = vadd.f32 %v929, 1.0
    %v1055 = vadd.f32 %v931, 1.0
    %v1056 = vadd.f32 %v933, 1.0
    %v1057 = vadd.f32 %v935, 1.0
    %v1058 = vadd.f32 %v937, 1.0
    %v1059 = vadd.f32 %v939, 1.0
    %v1060 = vadd.f32 %v941, 1.0
    %v1061 = vadd.f32 %v943, 1.0
    %v1062 = vadd.f32 %v945, 1.0
    %v1063 = vadd.f32 %v947, 1.0
    %v1064 = vadd.f32 %v949, 1.0
    %v1065 = vadd.f32 %v951, 1.0
    %v1066 = vadd.f32 %v953, 1.0
    %v1067 = vadd.f32 %v955, 1.0
    %v1068 = vadd.f32 %v957, 1.0
    %v1069 = vadd.f32 %v959, 1.0
    %v1070 = vadd.f32 %v961, 1.0
    %v1071 = vadd.f32 %v963, 1.0
    %v1072 = vadd.f32 %v965, 1.0
    %v1073 = vadd.f32 %v967, 1.0
    %v1074 = vadd.f32 %v969, 1.0
    %v1075 = vadd.f32 %v971, 1.0
    %v1076 = vadd.f32 %v973, 1.0
    %v1077 = vadd.f32 %v975, 1.0
    %v1078 = vadd.f32 %v977, 1.0
    %v1079 = vadd.f32 %v979, 1.0
    %v1080 = vadd.f32 %v981, 1.0
    %v1081 = vadd.f32 %v983, 1.0
    %v1082 = vadd.f32 %v985, 1.0
    %v1083 = vadd.f32 %v987, 1.0
    %v1084 = vadd.f32 %v989, 1.0
    %v1085 = vadd.f32 %v991, 1.0
    %v1086 = vadd.f32 %v993, 1.0
    %v1087 = vadd.f32 %v995, 1.0
    %v1088 = vadd.f32 %v997, 1.0
    %v1089 = vadd.f32 %v999, 1.0
    %v1090 = vadd.f32 %v1001, 1.0
    %v1091 = vadd.f32 %v1003, 1.0
    %v1092 = vadd.f32 %v1005, 1.0
    %v1093 = vadd.f32 %v1007, 1.0
    %v1094 = vadd.f32 %v1009, 1.0
    %v1095 = vadd.f32 %v1011, 1.0
    %v1096 = vadd.f32 %v1013, 1.0
    %v1097 = vadd.f32 %v1015, 1.0
    %v1098 = vadd.f32 %v1017, 1.0
    %v1099 = vadd.f32 %v1019, 1.0
    %v1100 = vadd.f32 %v1021, 1.0
    %v1101 = vadd.f32 %v1023, 1.0
    %v1102 = vadd.f32 %v1025, 1.0
    %v1103 = vadd.f32 %v1027, 1.0
    %v1104 = vadd.f32 %v1029, 1.0
    %v1105 = vadd.f32 %v1031, 1.0
    %v1106 = vadd.f32 %v1033, 1.0
    %v1107 = vadd.f32 %v1035, 1.0
    %v1108 = vadd.f32 %v1037, 1.0
    %v1109 = vadd.f32 %v1039, 1.0
    %v1110 = vadd.f32 %v1041, 1.0
    %v1111 = vadd.f32 %v1043, 1.0
    %v1112 = vadd.f32 %v1045, 1.0
    %v1113 = vadd.f32 %v1047, 1.0
    %v1114 = vadd.f32 %v1049, 1.0
    %v1115 = vadd.f32 %v1051, 1.0
    %v1116 = vmul.f32 %v860, %v1052
    %v1117 = vmul.f32 %v861, %v1053
    %v1118 = vmul.f32 %v862, %v1054
    %v1119 = vmul.f32 %v863, %v1055
    %v1120 = vmul.f32 %v864, %v1056
    %v1121 = vmul.f32 %v865, %v1057
    %v1122 = vmul.f32 %v866, %v1058
    %v1123 = vmul.f32 %v867, %v1059
    %v1124 = vmul.f32 %v868, %v1060
    %v1125 = vmul.f32 %v869, %v1061
    %v1126 = vmul.f32 %v870, %v1062
    %v1127 = vmul.f32 %v871, %v1063
    %v1128 = vmul.f32 %v872, %v1064
    %v1129 = vmul.f32 %v873, %v1065
    %v1130 = vmul.f32 %v874, %v1066
    %v1131 = vmul.f32 %v875, %v1067
    %v1132 = vmul.f32 %v876, %v1068
    %v1133 = vmul.f32 %v877, %v1069
    %v1134 = vmul.f32 %v878, %v1070
    %v1135 = vmul.f32 %v879, %v1071
    %v1136 = vmul.f32 %v880, %v1072
    %v1137 = vmul.f32 %v881, %v1073
    %v1138 = vmul.f32 %v882, %v1074
    %v1139 = vmul.f32 %v883, %v1075
    %v1140 = vmul.f32 %v884, %v1076
    %v1141 = vmul.f32 %v885, %v1077
    %v1142 = vmul.f32 %v886, %v1078
    %v1143 = vmul.f32 %v887, %v1079
    %v1144 = vmul.f32 %v888, %v1080
    %v1145 = vmul.f32 %v889, %v1081
    %v1146 = vmul.f32 %v890, %v1082
    %v1147 = vmul.f32 %v891, %v1083
    %v1148 = vmul.f32 %v892, %v1084
    %v1149 = vmul.f32 %v893, %v1085
    %v1150 = vmul.f32 %v894, %v1086
    %v1151 = vmul.f32 %v895, %v1087
    %v1152 = vmul.f32 %v896, %v1088
    %v1153 = vmul.f32 %v897, %v1089
    %v1154 = vmul.f32 %v898, %v1090
    %v1155 = vmul.f32 %v899, %v1091
    %v1156 = vmul.f32 %v900, %v1092
    %v1157 = vmul.f32 %v901, %v1093
    %v1158 = vmul.f32 %v902, %v1094
    %v1159 = vmul.f32 %v903, %v1095
    %v1160 = vmul.f32 %v904, %v1096
    %v1161 = vmul.f32 %v905, %v1097
    %v1162 = vmul.f32 %v906, %v1098
    %v1163 = vmul.f32 %v907, %v1099
    %v1164 = vmul.f32 %v908, %v1100
    %v1165 = vmul.f32 %v909, %v1101
    %v1166 = vmul.f32 %v910, %v1102
    %v1167 = vmul.f32 %v911, %v1103
    %v1168 = vmul.f32 %v912, %v1104
    %v1169 = vmul.f32 %v913, %v1105
    %v1170 = vmul.f32 %v914, %v1106
    %v1171 = vmul.f32 %v915, %v1107
    %v1172 = vmul.f32 %v916, %v1108
    %v1173 = vmul.f32 %v917, %v1109
    %v1174 = vmul.f32 %v918, %v1110
    %v1175 = vmul.f32 %v919, %v1111
    %v1176 = vmul.f32 %v920, %v1112
    %v1177 = vmul.f32 %v921, %v1113
    %v1178 = vmul.f32 %v922, %v1114
    %v1179 = vmul.f32 %v923, %v1115
    %v1180 = vsel %vm668, %v414, %v1116
    %v1181 = vsel %vm669, %v417, %v1117
    %v1182 = vsel %vm670, %v422, %v1118
    %v1183 = vsel %vm671, %v425, %v1119
    %v1184 = vsel %vm672, %v430, %v1120
    %v1185 = vsel %vm673, %v433, %v1121
    %v1186 = vsel %vm674, %v438, %v1122
    %v1187 = vsel %vm675, %v441, %v1123
    %v1188 = vsel %vm676, %v446, %v1124
    %v1189 = vsel %vm677, %v449, %v1125
    %v1190 = vsel %vm678, %v454, %v1126
    %v1191 = vsel %vm679, %v457, %v1127
    %v1192 = vsel %vm680, %v462, %v1128
    %v1193 = vsel %vm681, %v465, %v1129
    %v1194 = vsel %vm682, %v470, %v1130
    %v1195 = vsel %vm683, %v473, %v1131
    %v1196 = vsel %vm684, %v478, %v1132
    %v1197 = vsel %vm685, %v481, %v1133
    %v1198 = vsel %vm686, %v486, %v1134
    %v1199 = vsel %vm687, %v489, %v1135
    %v1200 = vsel %vm688, %v494, %v1136
    %v1201 = vsel %vm689, %v497, %v1137
    %v1202 = vsel %vm690, %v502, %v1138
    %v1203 = vsel %vm691, %v505, %v1139
    %v1204 = vsel %vm692, %v510, %v1140
    %v1205 = vsel %vm693, %v513, %v1141
    %v1206 = vsel %vm694, %v518, %v1142
    %v1207 = vsel %vm695, %v521, %v1143
    %v1208 = vsel %vm696, %v526, %v1144
    %v1209 = vsel %vm697, %v529, %v1145
    %v1210 = vsel %vm698, %v534, %v1146
    %v1211 = vsel %vm699, %v537, %v1147
    %v1212 = vsel %vm700, %v542, %v1148
    %v1213 = vsel %vm701, %v545, %v1149
    %v1214 = vsel %vm702, %v550, %v1150
    %v1215 = vsel %vm703, %v553, %v1151
    %v1216 = vsel %vm704, %v558, %v1152
    %v1217 = vsel %vm705, %v561, %v1153
    %v1218 = vsel %vm706, %v566, %v1154
    %v1219 = vsel %vm707, %v569, %v1155
    %v1220 = vsel %vm708, %v574, %v1156
    %v1221 = vsel %vm709, %v577, %v1157
    %v1222 = vsel %vm710, %v582, %v1158
    %v1223 = vsel %vm711, %v585, %v1159
    %v1224 = vsel %vm712, %v590, %v1160
    %v1225 = vsel %vm713, %v593, %v1161
    %v1226 = vsel %vm714, %v598, %v1162
    %v1227 = vsel %vm715, %v601, %v1163
    %v1228 = vsel %vm716, %v606, %v1164
    %v1229 = vsel %vm717, %v609, %v1165
    %v1230 = vsel %vm718, %v614, %v1166
    %v1231 = vsel %vm719, %v617, %v1167
    %v1232 = vsel %vm720, %v622, %v1168
    %v1233 = vsel %vm721, %v625, %v1169
    %v1234 = vsel %vm722, %v630, %v1170
    %v1235 = vsel %vm723, %v633, %v1171
    %v1236 = vsel %vm724, %v638, %v1172
    %v1237 = vsel %vm725, %v641, %v1173
    %v1238 = vsel %vm726, %v646, %v1174
    %v1239 = vsel %vm727, %v649, %v1175
    %v1240 = vsel %vm728, %v654, %v1176
    %v1241 = vsel %vm729, %v657, %v1177
    %v1242 = vsel %vm730, %v662, %v1178
    %v1243 = vsel %vm731, %v665, %v1179
    %v1244 = vld [vmem:[#allocation2] sm:$0x3]
    %v1245 = vmax.f32 %v1180, %v1182
    %v1246 = vmax.f32 %v1181, %v1183
    %v1247 = vmax.f32 %v1245, %v1184
    %v1248 = vmax.f32 %v1246, %v1185
    %v1249 = vmax.f32 %v1247, %v1186
    %v1250 = vmax.f32 %v1248, %v1187
    %v1251 = vmax.f32 %v1249, %v1188
    %v1252 = vmax.f32 %v1250, %v1189
    %v1253 = vmax.f32 %v1251, %v1190
    %v1254 = vmax.f32 %v1252, %v1191
    %v1255 = vmax.f32 %v1253, %v1192
    %v1256 = vmax.f32 %v1254, %v1193
    %v1257 = vmax.f32 %v1255, %v1194
    %v1258 = vmax.f32 %v1256, %v1195
    %v1259 = vmax.f32 %v1257, %v1196
    %v1260 = vmax.f32 %v1258, %v1197
    %v1261 = vmax.f32 %v1259, %v1198
    %v1262 = vmax.f32 %v1260, %v1199
    %v1263 = vmax.f32 %v1261, %v1200
    %v1264 = vmax.f32 %v1262, %v1201
    %v1265 = vmax.f32 %v1263, %v1202
    %v1266 = vmax.f32 %v1264, %v1203
    %v1267 = vmax.f32 %v1265, %v1204
    %v1268 = vmax.f32 %v1266, %v1205
    %v1269 = vmax.f32 %v1267, %v1206
    %v1270 = vmax.f32 %v1268, %v1207
    %v1271 = vmax.f32 %v1269, %v1208
    %v1272 = vmax.f32 %v1270, %v1209
    %v1273 = vmax.f32 %v1271, %v1210
    %v1274 = vmax.f32 %v1272, %v1211
    %v1275 = vmax.f32 %v1273, %v1274
    %v1276 = vrot.slane %v1275, 4
    %v1277 = vmax.f32 %v1275, %v1276
    %v1278 = vrot.slane %v1277, 2
    %v1279 = vmax.f32 %v1277, %v1278
    %v1280 = vrot.slane %v1279, 1
    %v1281 = vmax.f32 %v1279, %v1280
    %v1282 = vmax.f32 %v1212, %v1214
    %v1283 = vmax.f32 %v1213, %v1215
    %v1284 = vmax.f32 %v1282, %v1216
    %v1285 = vmax.f32 %v1283, %v1217
    %v1286 = vmax.f32 %v1284, %v1218
    %v1287 = vmax.f32 %v1285, %v1219
    %v1288 = vmax.f32 %v1286, %v1220
    %v1289 = vmax.f32 %v1287, %v1221
    %v1290 = vmax.f32 %v1288, %v1222
    %v1291 = vmax.f32 %v1289, %v1223
    %v1292 = vmax.f32 %v1290, %v1224
    %v1293 = vmax.f32 %v1291, %v1225
    %v1294 = vmax.f32 %v1292, %v1226
    %v1295 = vmax.f32 %v1293, %v1227
    %v1296 = vmax.f32 %v1294, %v1228
    %v1297 = vmax.f32 %v1295, %v1229
    %v1298 = vmax.f32 %v1296, %v1230
    %v1299 = vmax.f32 %v1297, %v1231
    %v1300 = vmax.f32 %v1298, %v1232
    %v1301 = vmax.f32 %v1299, %v1233
    %v1302 = vmax.f32 %v1300, %v1234
    %v1303 = vmax.f32 %v1301, %v1235
    %v1304 = vmax.f32 %v1302, %v1236
    %v1305 = vmax.f32 %v1303, %v1237
    %v1306 = vmax.f32 %v1304, %v1238
    %v1307 = vmax.f32 %v1305, %v1239
    %v1308 = vmax.f32 %v1306, %v1240
    %v1309 = vmax.f32 %v1307, %v1241
    %v1310 = vmax.f32 %v1308, %v1242
    %v1311 = vmax.f32 %v1309, %v1243
    %v1312 = vmax.f32 %v1310, %v1311
    %v1313 = vrot.slane %v1312, 4
    %v1314 = vmax.f32 %v1312, %v1313
    %v1315 = vrot.slane %v1314, 2
    %v1316 = vmax.f32 %v1314, %v1315
    %v1317 = vrot.slane %v1316, 1
    %v1318 = vmax.f32 %v1316, %v1317
    %vm1321 = vcmask 1041409
    %v1322 = vsel %vm1321, %v1318, %v1281
    %v1324 = vmax.f32 %v1244, %v1322
    %1325 = vst [vmem:[#allocation2] sm:$0x3] %v1324
    // Predicated region
    $region26: #{yopo_final_forward.1} parent=1 // pred_check
      %p1326 = pneg %p22
    $region27: #{yopo_final_forward.1} parent=1 // pred_check_branch
      %1328 = sbr.rel (%p1326) target = $region29
    $region28: #{yopo_final_forward.1} parent=1 // pred_region
      %v1329 = vld [vmem:[#allocation2] sm:$0x3]
      %v1330 = vpack.c.bf16 %v1329, %v1329
      %v1331 = vld [vmem:[%s3] sm:$0xf]
      %v1332 = vld [vmem:[%s3 + $0x4] sm:$0xf]
      %v1333 = vld [vmem:[%s3 + $0x8] sm:$0xf]
      %v1334 = vld [vmem:[%s3 + $0xc] sm:$0xf]
      %v1335 = vld [vmem:[%s3 + $0x10] sm:$0xf]
      %v1336 = vld [vmem:[%s3 + $0x14] sm:$0xf]
      %v1337 = vld [vmem:[%s3 + $0x18] sm:$0xf]
      %v1338 = vld [vmem:[%s3 + $0x1c] sm:$0xf]
      %v1339 = vld [vmem:[%s3 + $0x20] sm:$0xf]
      %v1340 = vld [vmem:[%s3 + $0x24] sm:$0xf]
      %v1341 = vld [vmem:[%s3 + $0x28] sm:$0xf]
      %v1342 = vld [vmem:[%s3 + $0x2c] sm:$0xf]
      %v1343 = vld [vmem:[%s3 + $0x30] sm:$0xf]
      %v1344 = vld [vmem:[%s3 + $0x34] sm:$0xf]
      %v1345 = vld [vmem:[%s3 + $0x38] sm:$0xf]
      %v1346 = vld [vmem:[%s3 + $0x3c] sm:$0xf]
      %v1347 = vld [vmem:[%s4] sm:$0x1]
      %v1349 = vlaneseq
      %v1350 = vshrl.u32 %v1349, 7
      %v1351 = vsub.s32 0, %v1350
      %v1352 = vrot.slane %v1347, %v1351
      %v1370 = vunpack.c.l.b16 %v1331
      %v1371 = vunpack.c.l.b16 %v1332
      %v1372 = vunpack.c.l.b16 %v1333
      %v1373 = vunpack.c.l.b16 %v1334
      %v1374 = vunpack.c.l.b16 %v1335
      %v1375 = vunpack.c.l.b16 %v1336
      %v1376 = vunpack.c.l.b16 %v1337
      %v1377 = vunpack.c.l.b16 %v1338
      %v1378 = vunpack.c.l.b16 %v1339
      %v1379 = vunpack.c.l.b16 %v1340
      %v1380 = vunpack.c.l.b16 %v1341
      %v1381 = vunpack.c.l.b16 %v1342
      %v1382 = vunpack.c.l.b16 %v1343
      %v1383 = vunpack.c.l.b16 %v1344
      %v1384 = vunpack.c.l.b16 %v1345
      %v1385 = vunpack.c.l.b16 %v1346
      %v1386 = vpack.c.b16 %v1371, %v1370
      %v1387 = vpack.c.b16 %v1373, %v1372
      %v1388 = vpack.c.b16 %v1375, %v1374
      %v1389 = vpack.c.b16 %v1377, %v1376
      %v1390 = vpack.c.b16 %v1379, %v1378
      %v1391 = vpack.c.b16 %v1381, %v1380
      %v1392 = vpack.c.b16 %v1383, %v1382
      %v1393 = vpack.c.b16 %v1385, %v1384
      %1402 = vmatprep.subr.bf16.mxu0 0
      %1403 = vmatpush1.bf16.msra.mxu0 %v1386
      %1404 = vmatprep.subr.bf16.mxu0 0
      %1405 = vmatpush1.bf16.msra.mxu0 %v1387
      %1406 = vmatprep.subr.bf16.mxu0 0
      %1407 = vmatpush1.bf16.msra.mxu0 %v1388
      %1408 = vmatprep.subr.bf16.mxu0 0
      %1409 = vmatpush1.bf16.msra.mxu0 %v1389
      %1410 = vmatprep.subr.bf16.mxu0 0
      %1411 = vmatpush1.bf16.msra.mxu0 %v1390
      %1412 = vmatprep.subr.bf16.mxu0 0
      %1413 = vmatpush1.bf16.msra.mxu0 %v1391
      %1414 = vmatprep.subr.bf16.mxu0 0
      %1415 = vmatpush1.bf16.msra.mxu0 %v1392
      %1416 = vmatprep.subr.bf16.mxu0 0
      %1417 = vmatpush1.bf16.msra.mxu0 %v1393
      %1418 = vmatprep.subr.bf16.mxu0 0
      %1419 = vmatpush1.bf16.msra.mxu0 0
      %1420 = vmatprep.subr.bf16.mxu0 0
      %1421 = vmatpush1.bf16.msra.mxu0 0
      %1422 = vmatprep.subr.bf16.mxu0 0
      %1423 = vmatpush1.bf16.msra.mxu0 0
      %1424 = vmatprep.subr.bf16.mxu0 0
      %1425 = vmatpush1.bf16.msra.mxu0 0
      %1426 = vmatprep.subr.bf16.mxu0 0
      %1427 = vmatpush1.bf16.msra.mxu0 0
      %1428 = vmatprep.subr.bf16.mxu0 0
      %1429 = vmatpush1.bf16.msra.mxu0 0
      %1430 = vmatprep.subr.bf16.mxu0 0
      %1431 = vmatpush1.bf16.msra.mxu0 0
      %1432 = vmatprep.subr.bf16.mxu0 0
      %1433 = vmatpush1.bf16.msra.mxu0 0
      %1434 = vmatprep.mubr.bf16.mxu0 0
      %1435 = vmatmul.mubr.bf16.gmra.mrb[0].mxu0 %v1330
      %v1436 = vpop.f32.mrb[0].mxu0
      %v1437 = vadd.f32 %v1352, %v1436
      %v1438 = vpop.f32.mrb[0].mxu0
      %v1439 = vpop.f32.mrb[0].mxu0
      %v1440 = vpop.f32.mrb[0].mxu0
      %1441 = vdwg.mxu0
      %v1442 = vsel %vm375, %v1437, -inf
      %1443 = vmax.xlane.f32.xlu0 %v1442
      %v1444 = vpop.xlane.xlu0 %1443
      %v1445 = vsub.f32 %v1437, %v1444
      %v1446 = vmul.f32 %v1445, 1.442695
      %v1447 = vpow.pop %v1446
      %v1448 = vsel %vm375, %v1447, 0.0
      %1449 = vadd.xlane.f32.xlu0 %v1448
      %v1450 = vpop.xlane.xlu0 %1449
      %v1451 = vrcp.pop %v1450
      %v1452 = vmul.f32 %v1447, %v1451
      %v1455 = vunpack.c.l.s4 1966171168
      %v1456 = vunpack.c.0.s8 %v1455
      %v1457 = vlaneseq
      %v1458 = vshrl.u32 %v1457, 7
      %v1459 = vsub.s32 %v1456, %v1458
      %v1460 = vrot.slane %v1452, %v1459
      %v1461 = vcombine.high %v1460, %v1460
      %v1463 = vunpack.c.l.s4 1966171168
      %v1464 = vunpack.c.0.s8 %v1463
      %v1465 = vlaneseq
      %v1466 = vshrl.u32 %v1465, 7
      %v1467 = vsub.s32 %v1464, %v1466
      %v1468 = vrot.slane %v1460, %v1467
      %v1470 = vunpack.c.l.s4 1966171168
      %v1471 = vunpack.c.0.s8 %v1470
      %v1472 = vlaneseq
      %v1473 = vshrl.u32 %v1472, 7
      %v1474 = vsub.s32 %v1471, %v1473
      %v1475 = vrot.slane %v1461, %v1474
      %1478 = vst [vmem:[#allocation3] sm:$0x1] %v1468
      %1479 = vst [vmem:[#allocation3 + $0x1] sm:$0x1] %v1475
    $region29: #{yopo_final_forward.1} parent=1 // pred_fallthru
      _
    // Predicated region
    $region30: #{yopo_final_forward.1} parent=1 // pred_check
      _
    $region31: #{yopo_final_forward.1} parent=1 // pred_check_branch
      %1481 = sbr.rel (0) target = $region33
    $region32: #{yopo_final_forward.1} parent=1 // pred_region
      %s1483 = ssub.s32 32, 32
      %1484 = vsyncadd [#allocation4], %s1483
      %s1485 = sshll.u32 [#allocation3], 4
      %s1486 = int_to_ptr.vmem [resolvable:$true] %s1485
      %1491 = dma.vmem_to_hbm [thread:$0]  %s1486, 32, %s5, [#allocation4], 16, 16, 1
    $region33: #{yopo_final_forward.1} parent=1 // pred_fallthru
      _
    // Predicated region
    $region34: #{yopo_final_forward.1} parent=1 // pred_check
      _
    $region35: #{yopo_final_forward.1} parent=1 // pred_check_branch
      %1493 = sbr.rel (0) target = $region37
    $region36: #{yopo_final_forward.1} parent=1 // pred_region
      %1494 = dma.done [#allocation4], 32
    $region37: #{yopo_final_forward.1} parent=1 // pred_fallthru
      _
    %1495 = vsyncpa [#allocation4], 1

</llo_original>
